<compile_context>
chip_gen: v5e
topology: v5e:2x2
jax: 0.10.0
libtpu: 0.0.40
codegen_flags: <defaults>
</compile_context>

<pallas_src>
import functools
import math

import jax
import jax.numpy as jnp
from jax.experimental import pallas as pl
from jax.experimental.pallas import tpu as pltpu

LANE = 128
SUBLANE = 16  # bf16 sublane packing


def _round_up(n, m):
    return ((n + m - 1) // m) * m


def _pad2(a, rows, cols):
    return jnp.pad(a, ((0, rows - a.shape[0]), (0, cols - a.shape[1])))


def _vae_kernel(
    x_ref, eps_ref,
    w1_ref, b1_ref, w2_ref, b2_ref,
    wlat_ref, blat_ref,
    wd1_ref, bd1_ref, wd2_ref, bd2_ref, wd3_ref, bd3_ref,
    recon_ref, mulv_ref,
    *, l_pad,
):
    # ---------------- encoder (Dropout == identity in eval) ----------------
    h = jnp.dot(x_ref[...], w1_ref[...],
                preferred_element_type=jnp.float32) + b1_ref[...]
    h = jnp.maximum(h, 0.0)
    h = jnp.dot(h.astype(jnp.bfloat16), w2_ref[...],
                preferred_element_type=jnp.float32) + b2_ref[...]
    h = jnp.maximum(h, 0.0)

    # ------------- fused latent heads: [mu | logvar] in one matmul ----------
    mulv = jnp.dot(h.astype(jnp.bfloat16), wlat_ref[...],
                   preferred_element_type=jnp.float32) + blat_ref[...]
    mu = mulv[:, :l_pad]
    logvar = mulv[:, l_pad:]

    # ---------------- reparameterize (f32 elementwise) ----------------------
    z = mu + eps_ref[...] * jnp.exp(0.5 * logvar)

    # ---------------- decoder ----------------------------------------------
    d = jnp.dot(z.astype(jnp.bfloat16), wd1_ref[...],
                preferred_element_type=jnp.float32) + bd1_ref[...]
    d = jnp.maximum(d, 0.0)
    d = jnp.dot(d.astype(jnp.bfloat16), wd2_ref[...],
                preferred_element_type=jnp.float32) + bd2_ref[...]
    d = jnp.maximum(d, 0.0)
    recon = jnp.dot(d.astype(jnp.bfloat16), wd3_ref[...],
                    preferred_element_type=jnp.float32) + bd3_ref[...]

    recon_ref[...] = recon
    mulv_ref[...] = mulv


def vae_forward(x, eps, params, *, block_batch=128):
    """Fused VAE forward pass.

    x:   (B, input_dim) float32
    eps: (B, latent_dim) float32 standard-normal noise for reparameterization
    params: dict of weights (in, out) and biases (1, out), all float32
    returns (recon, mu, logvar) in float32, unpadded shapes.
    """
    B, input_dim = x.shape
    latent_dim = params["wmu"].shape[1]
    h1 = params["w1"].shape[1]   # 512
    h2 = params["w2"].shape[1]   # 256

    d_pad = _round_up(input_dim, LANE)
    l_pad = _round_up(latent_dim, LANE)
    tb = min(block_batch, _round_up(B, SUBLANE))
    b_pad = _round_up(B, tb)

    # ---- pad to lane-dense shapes; bf16 matmul operands, f32 biases --------
    x_p = _pad2(x, b_pad, d_pad).astype(jnp.bfloat16)
    eps_p = _pad2(eps, b_pad, l_pad).astype(jnp.float32)

    w1 = _pad2(params["w1"], d_pad, h1).astype(jnp.bfloat16)
    b1 = params["b1"].astype(jnp.float32)
    w2 = params["w2"].astype(jnp.bfloat16)
    b2 = params["b2"].astype(jnp.float32)
    wlat = jnp.concatenate(
        [_pad2(params["wmu"], h2, l_pad), _pad2(params["wlv"], h2, l_pad)],
        axis=1).astype(jnp.bfloat16)
    blat = jnp.concatenate(
        [_pad2(params["bmu"], 1, l_pad), _pad2(params["blv"], 1, l_pad)],
        axis=1).astype(jnp.float32)
    wd1 = _pad2(params["wd1"], l_pad, h2).astype(jnp.bfloat16)
    bd1 = params["bd1"].astype(jnp.float32)
    wd2 = params["wd2"].astype(jnp.bfloat16)
    bd2 = params["bd2"].astype(jnp.float32)
    wd3 = _pad2(params["wd3"], h1, d_pad).astype(jnp.bfloat16)
    bd3 = _pad2(params["bd3"], 1, d_pad).astype(jnp.float32)

    operands = [x_p, eps_p,
                w1, b1, w2, b2,
                wlat, blat,
                wd1, bd1, wd2, bd2, wd3, bd3]

    # Activation tiles walk the batch grid; weights/biases are resident.
    act = lambda cols: pl.BlockSpec((tb, cols), lambda i: (i, 0))
    resident = lambda shape: pl.BlockSpec(shape, lambda i: (0, 0))

    in_specs = [act(d_pad), act(l_pad)] + [resident(op.shape) for op in operands[2:]]

    out_shape = (
        jax.ShapeDtypeStruct((b_pad, d_pad), jnp.float32),      # recon (padded)
        jax.ShapeDtypeStruct((b_pad, 2 * l_pad), jnp.float32),  # [mu | logvar]
    )
    out_specs = (act(d_pad), act(2 * l_pad))

    flops = 2 * b_pad * (d_pad * h1 + h1 * h2 + h2 * (2 * l_pad)
                         + l_pad * h2 + h2 * h1 + h1 * d_pad)
    bytes_accessed = int(sum(op.size * op.dtype.itemsize for op in operands)
                         + sum(math.prod(o.shape) * 4 for o in out_shape))

    recon_p, mulv_p = pl.pallas_call(
        functools.partial(_vae_kernel, l_pad=l_pad),
        out_shape=out_shape,
        grid_spec=pltpu.PrefetchScalarGridSpec(
            num_scalar_prefetch=0,
            grid=(b_pad // tb,),
            in_specs=in_specs,
            out_specs=out_specs,
        ),
        compiler_params=pltpu.CompilerParams(
            dimension_semantics=("parallel",),
        ),
        cost_estimate=pl.CostEstimate(
            flops=int(flops),
            transcendentals=int(b_pad * l_pad),
            bytes_accessed=bytes_accessed,
        ),
    )(*operands)

    recon = recon_p[:B, :input_dim]
    mu = mulv_p[:B, :latent_dim]
    logvar = mulv_p[:B, l_pad:l_pad + latent_dim]
    return recon, mu, logvar


def init_params(key, input_dim, latent_dim):
    """Deterministic parameter init (Kaiming-uniform-ish like torch Linear)."""
    def linear(k, fan_in, fan_out):
        kw, kb = jax.random.split(k)
        bound = 1.0 / jnp.sqrt(fan_in)
        w = jax.random.uniform(kw, (fan_in, fan_out), jnp.float32, -bound, bound)
        b = jax.random.uniform(kb, (1, fan_out), jnp.float32, -bound, bound)
        return w, b

    keys = jax.random.split(key, 7)
    p = {}
    p["w1"], p["b1"] = linear(keys[0], input_dim, 512)
    p["w2"], p["b2"] = linear(keys[1], 512, 256)
    p["wmu"], p["bmu"] = linear(keys[2], 256, latent_dim)
    p["wlv"], p["blv"] = linear(keys[3], 256, latent_dim)
    p["wd1"], p["bd1"] = linear(keys[4], latent_dim, 256)
    p["wd2"], p["bd2"] = linear(keys[5], 256, 512)
    p["wd3"], p["bd3"] = linear(keys[6], 512, input_dim)
    return p


def vae_forward_ref(x, eps, p):
    """Pure-JAX f32 reference for correctness check."""
    relu = lambda v: jnp.maximum(v, 0.0)
    h = relu(x @ p["w1"] + p["b1"])
    h = relu(h @ p["w2"] + p["b2"])
    mu = h @ p["wmu"] + p["bmu"]
    logvar = h @ p["wlv"] + p["blv"]
    z = mu + eps * jnp.exp(0.5 * logvar)
    d = relu(z @ p["wd1"] + p["bd1"])
    d = relu(d @ p["wd2"] + p["bd2"])
    recon = d @ p["wd3"] + p["bd3"]
    return recon, mu, logvar


if __name__ == "__main__":
    # TODO(synk): dropout is implemented as identity (inference-mode forward);
    # training-mode stochastic dropout masks are out of scope here.
    input_dim = 64
    latent_dim = 10
    batch = 8

    key = jax.random.PRNGKey(0)
    kx, keps, kp = jax.random.split(key, 3)

    x = jax.random.normal(kx, (batch, input_dim), dtype=jnp.float32)
    eps = jax.random.normal(keps, (batch, latent_dim), dtype=jnp.float32)
    params = init_params(kp, input_dim, latent_dim)

    recon, mu, logvar = vae_forward(x, eps, params)
    jax.block_until_ready((recon, mu, logvar))

    recon_r, mu_r, logvar_r = vae_forward_ref(x, eps, params)
    # bf16 matmul operands (f32 accumulation) -> ~1% relative error budget.
    assert recon.shape == recon_r.shape and mu.shape == mu_r.shape
    assert jnp.allclose(recon, recon_r, atol=5e-2, rtol=5e-2)
    assert jnp.allclose(mu, mu_r, atol=5e-2, rtol=5e-2)
    assert jnp.allclose(logvar, logvar_r, atol=5e-2, rtol=5e-2)

    print("KERNEL_OK")
</pallas_src>

<mosaic_0001>
module attributes {stable_mosaic.version = 11 : i64} {
  func.func @_vae_kernel(%arg0: i32, %arg1: memref<16x128xbf16, #tpu.memory_space<vmem>>, %arg2: memref<16x128xf32, #tpu.memory_space<vmem>>, %arg3: memref<128x512xbf16, #tpu.memory_space<vmem>>, %arg4: memref<1x512xf32, #tpu.memory_space<vmem>>, %arg5: memref<512x256xbf16, #tpu.memory_space<vmem>>, %arg6: memref<1x256xf32, #tpu.memory_space<vmem>>, %arg7: memref<256x256xbf16, #tpu.memory_space<vmem>>, %arg8: memref<1x256xf32, #tpu.memory_space<vmem>>, %arg9: memref<128x256xbf16, #tpu.memory_space<vmem>>, %arg10: memref<1x256xf32, #tpu.memory_space<vmem>>, %arg11: memref<256x512xbf16, #tpu.memory_space<vmem>>, %arg12: memref<1x512xf32, #tpu.memory_space<vmem>>, %arg13: memref<512x128xbf16, #tpu.memory_space<vmem>>, %arg14: memref<1x128xf32, #tpu.memory_space<vmem>>, %arg15: memref<16x128xf32, #tpu.memory_space<vmem>>, %arg16: memref<16x256xf32, #tpu.memory_space<vmem>>) attributes {dimension_semantics = [#tpu.dimension_semantics<parallel>], iteration_bounds = array<i64: 1>, scalar_prefetch = 0 : i64, scratch_operands = 0 : i64, tpu.core_type = #tpu.core_type<tc>, window_params = [{transform_indices = @transform_0, window_bounds = array<i64: 16, 128>}, {transform_indices = @transform_1, window_bounds = array<i64: 16, 128>}, {pipeline_mode = #tpu.pipeline_mode<synchronous>, transform_indices = @transform_2, window_bounds = array<i64: 128, 512>}, {pipeline_mode = #tpu.pipeline_mode<synchronous>, transform_indices = @transform_3, window_bounds = array<i64: 1, 512>}, {pipeline_mode = #tpu.pipeline_mode<synchronous>, transform_indices = @transform_4, window_bounds = array<i64: 512, 256>}, {pipeline_mode = #tpu.pipeline_mode<synchronous>, transform_indices = @transform_5, window_bounds = array<i64: 1, 256>}, {pipeline_mode = #tpu.pipeline_mode<synchronous>, transform_indices = @transform_6, window_bounds = array<i64: 256, 256>}, {pipeline_mode = #tpu.pipeline_mode<synchronous>, transform_indices = @transform_7, window_bounds = array<i64: 1, 256>}, {pipeline_mode = #tpu.pipeline_mode<synchronous>, transform_indices = @transform_8, window_bounds = array<i64: 128, 256>}, {pipeline_mode = #tpu.pipeline_mode<synchronous>, transform_indices = @transform_9, window_bounds = array<i64: 1, 256>}, {pipeline_mode = #tpu.pipeline_mode<synchronous>, transform_indices = @transform_10, window_bounds = array<i64: 256, 512>}, {pipeline_mode = #tpu.pipeline_mode<synchronous>, transform_indices = @transform_11, window_bounds = array<i64: 1, 512>}, {pipeline_mode = #tpu.pipeline_mode<synchronous>, transform_indices = @transform_12, window_bounds = array<i64: 512, 128>}, {pipeline_mode = #tpu.pipeline_mode<synchronous>, transform_indices = @transform_13, window_bounds = array<i64: 1, 128>}, {transform_indices = @transform_14, window_bounds = array<i64: 16, 128>}, {transform_indices = @transform_15, window_bounds = array<i64: 16, 256>}]} {
    %c0 = arith.constant 0 : index
    %c0_0 = arith.constant 0 : index
    %0 = vector.load %arg1[%c0, %c0_0] : memref<16x128xbf16, #tpu.memory_space<vmem>>, vector<16x128xbf16>
    %c0_1 = arith.constant 0 : index
    %c0_2 = arith.constant 0 : index
    %1 = vector.load %arg3[%c0_1, %c0_2] : memref<128x512xbf16, #tpu.memory_space<vmem>>, vector<128x512xbf16>
    %cst = arith.constant dense<0.000000e+00> : vector<16x512xf32>
    %2 = tpu.matmul %0, %1, %cst {dimension_numbers = #tpu.dot_dimension_numbers<[1], [0], [0], [1], [0, 0, 1, 1], [], []>} : vector<16x128xbf16>, vector<128x512xbf16>, vector<16x512xf32> -> vector<16x512xf32>
    %c0_3 = arith.constant 0 : index
    %c0_4 = arith.constant 0 : index
    %3 = vector.load %arg4[%c0_3, %c0_4] : memref<1x512xf32, #tpu.memory_space<vmem>>, vector<1x512xf32>
    %4 = vector.broadcast %3 : vector<1x512xf32> to vector<16x512xf32>
    %5 = arith.addf %2, %4 : vector<16x512xf32>
    %cst_5 = arith.constant 0.000000e+00 : f32
    %6 = vector.broadcast %cst_5 : f32 to vector<16x512xf32>
    %7 = arith.maximumf %5, %6 : vector<16x512xf32>
    %8 = arith.truncf %7 : vector<16x512xf32> to vector<16x512xbf16>
    %c0_6 = arith.constant 0 : index
    %c0_7 = arith.constant 0 : index
    %9 = vector.load %arg5[%c0_6, %c0_7] : memref<512x256xbf16, #tpu.memory_space<vmem>>, vector<512x256xbf16>
    %cst_8 = arith.constant dense<0.000000e+00> : vector<16x256xf32>
    %10 = tpu.matmul %8, %9, %cst_8 {dimension_numbers = #tpu.dot_dimension_numbers<[1], [0], [0], [1], [0, 0, 1, 1], [], []>} : vector<16x512xbf16>, vector<512x256xbf16>, vector<16x256xf32> -> vector<16x256xf32>
    %c0_9 = arith.constant 0 : index
    %c0_10 = arith.constant 0 : index
    %11 = vector.load %arg6[%c0_9, %c0_10] : memref<1x256xf32, #tpu.memory_space<vmem>>, vector<1x256xf32>
    %12 = vector.broadcast %11 : vector<1x256xf32> to vector<16x256xf32>
    %13 = arith.addf %10, %12 : vector<16x256xf32>
    %cst_11 = arith.constant 0.000000e+00 : f32
    %14 = vector.broadcast %cst_11 : f32 to vector<16x256xf32>
    %15 = arith.maximumf %13, %14 : vector<16x256xf32>
    %16 = arith.truncf %15 : vector<16x256xf32> to vector<16x256xbf16>
    %c0_12 = arith.constant 0 : index
    %c0_13 = arith.constant 0 : index
    %17 = vector.load %arg7[%c0_12, %c0_13] : memref<256x256xbf16, #tpu.memory_space<vmem>>, vector<256x256xbf16>
    %cst_14 = arith.constant dense<0.000000e+00> : vector<16x256xf32>
    %18 = tpu.matmul %16, %17, %cst_14 {dimension_numbers = #tpu.dot_dimension_numbers<[1], [0], [0], [1], [0, 0, 1, 1], [], []>} : vector<16x256xbf16>, vector<256x256xbf16>, vector<16x256xf32> -> vector<16x256xf32>
    %c0_15 = arith.constant 0 : index
    %c0_16 = arith.constant 0 : index
    %19 = vector.load %arg8[%c0_15, %c0_16] : memref<1x256xf32, #tpu.memory_space<vmem>>, vector<1x256xf32>
    %20 = vector.broadcast %19 : vector<1x256xf32> to vector<16x256xf32>
    %21 = arith.addf %18, %20 : vector<16x256xf32>
    %22 = vector.extract_strided_slice %21 {offsets = [0, 0], sizes = [16, 128], strides = [1, 1]} : vector<16x256xf32> to vector<16x128xf32>
    %23 = vector.extract_strided_slice %21 {offsets = [0, 128], sizes = [16, 128], strides = [1, 1]} : vector<16x256xf32> to vector<16x128xf32>
    %c0_17 = arith.constant 0 : index
    %c0_18 = arith.constant 0 : index
    %24 = vector.load %arg2[%c0_17, %c0_18] : memref<16x128xf32, #tpu.memory_space<vmem>>, vector<16x128xf32>
    %cst_19 = arith.constant 5.000000e-01 : f32
    %25 = vector.broadcast %cst_19 : f32 to vector<16x128xf32>
    %26 = arith.mulf %25, %23 : vector<16x128xf32>
    %27 = math.exp %26 : vector<16x128xf32>
    %28 = arith.mulf %24, %27 : vector<16x128xf32>
    %29 = arith.addf %22, %28 : vector<16x128xf32>
    %30 = arith.truncf %29 : vector<16x128xf32> to vector<16x128xbf16>
    %c0_20 = arith.constant 0 : index
    %c0_21 = arith.constant 0 : index
    %31 = vector.load %arg9[%c0_20, %c0_21] : memref<128x256xbf16, #tpu.memory_space<vmem>>, vector<128x256xbf16>
    %cst_22 = arith.constant dense<0.000000e+00> : vector<16x256xf32>
    %32 = tpu.matmul %30, %31, %cst_22 {dimension_numbers = #tpu.dot_dimension_numbers<[1], [0], [0], [1], [0, 0, 1, 1], [], []>} : vector<16x128xbf16>, vector<128x256xbf16>, vector<16x256xf32> -> vector<16x256xf32>
    %c0_23 = arith.constant 0 : index
    %c0_24 = arith.constant 0 : index
    %33 = vector.load %arg10[%c0_23, %c0_24] : memref<1x256xf32, #tpu.memory_space<vmem>>, vector<1x256xf32>
    %34 = vector.broadcast %33 : vector<1x256xf32> to vector<16x256xf32>
    %35 = arith.addf %32, %34 : vector<16x256xf32>
    %cst_25 = arith.constant 0.000000e+00 : f32
    %36 = vector.broadcast %cst_25 : f32 to vector<16x256xf32>
    %37 = arith.maximumf %35, %36 : vector<16x256xf32>
    %38 = arith.truncf %37 : vector<16x256xf32> to vector<16x256xbf16>
    %c0_26 = arith.constant 0 : index
    %c0_27 = arith.constant 0 : index
    %39 = vector.load %arg11[%c0_26, %c0_27] : memref<256x512xbf16, #tpu.memory_space<vmem>>, vector<256x512xbf16>
    %cst_28 = arith.constant dense<0.000000e+00> : vector<16x512xf32>
    %40 = tpu.matmul %38, %39, %cst_28 {dimension_numbers = #tpu.dot_dimension_numbers<[1], [0], [0], [1], [0, 0, 1, 1], [], []>} : vector<16x256xbf16>, vector<256x512xbf16>, vector<16x512xf32> -> vector<16x512xf32>
    %c0_29 = arith.constant 0 : index
    %c0_30 = arith.constant 0 : index
    %41 = vector.load %arg12[%c0_29, %c0_30] : memref<1x512xf32, #tpu.memory_space<vmem>>, vector<1x512xf32>
    %42 = vector.broadcast %41 : vector<1x512xf32> to vector<16x512xf32>
    %43 = arith.addf %40, %42 : vector<16x512xf32>
    %cst_31 = arith.constant 0.000000e+00 : f32
    %44 = vector.broadcast %cst_31 : f32 to vector<16x512xf32>
    %45 = arith.maximumf %43, %44 : vector<16x512xf32>
    %46 = arith.truncf %45 : vector<16x512xf32> to vector<16x512xbf16>
    %c0_32 = arith.constant 0 : index
    %c0_33 = arith.constant 0 : index
    %47 = vector.load %arg13[%c0_32, %c0_33] : memref<512x128xbf16, #tpu.memory_space<vmem>>, vector<512x128xbf16>
    %cst_34 = arith.constant dense<0.000000e+00> : vector<16x128xf32>
    %48 = tpu.matmul %46, %47, %cst_34 {dimension_numbers = #tpu.dot_dimension_numbers<[1], [0], [0], [1], [0, 0, 1, 1], [], []>} : vector<16x512xbf16>, vector<512x128xbf16>, vector<16x128xf32> -> vector<16x128xf32>
    %c0_35 = arith.constant 0 : index
    %c0_36 = arith.constant 0 : index
    %49 = vector.load %arg14[%c0_35, %c0_36] : memref<1x128xf32, #tpu.memory_space<vmem>>, vector<1x128xf32>
    %50 = vector.broadcast %49 : vector<1x128xf32> to vector<16x128xf32>
    %51 = arith.addf %48, %50 : vector<16x128xf32>
    %c0_37 = arith.constant 0 : index
    %c0_38 = arith.constant 0 : index
    %52 = vector.load %arg15[%c0_37, %c0_38] : memref<16x128xf32, #tpu.memory_space<vmem>>, vector<16x128xf32>
    tpu.vector_store %arg15[%c0_37, %c0_38], %51 {strides = array<i32>} : memref<16x128xf32, #tpu.memory_space<vmem>>, vector<16x128xf32>,
    %c0_39 = arith.constant 0 : index
    %c0_40 = arith.constant 0 : index
    %53 = vector.load %arg16[%c0_39, %c0_40] : memref<16x256xf32, #tpu.memory_space<vmem>>, vector<16x256xf32>
    tpu.vector_store %arg16[%c0_39, %c0_40], %21 {strides = array<i32>} : memref<16x256xf32, #tpu.memory_space<vmem>>, vector<16x256xf32>,
    return
  }
  func.func @transform_0(%arg0: i32) -> (i32, i32) {
    %c0_i32 = arith.constant 0 : i32
    %c0_i32_0 = arith.constant 0 : i32
    return %arg0, %c0_i32 : i32, i32
  }
  func.func @transform_1(%arg0: i32) -> (i32, i32) {
    %c0_i32 = arith.constant 0 : i32
    %c0_i32_0 = arith.constant 0 : i32
    return %arg0, %c0_i32 : i32, i32
  }
  func.func @transform_2(%arg0: i32) -> (i32, i32) {
    %c0_i32 = arith.constant 0 : i32
    %c0_i32_0 = arith.constant 0 : i32
    %c0_i32_1 = arith.constant 0 : i32
    return %c0_i32, %c0_i32_0 : i32, i32
  }
  func.func @transform_3(%arg0: i32) -> (i32, i32) {
    %c0_i32 = arith.constant 0 : i32
    %c0_i32_0 = arith.constant 0 : i32
    %c0_i32_1 = arith.constant 0 : i32
    return %c0_i32, %c0_i32_0 : i32, i32
  }
  func.func @transform_4(%arg0: i32) -> (i32, i32) {
    %c0_i32 = arith.constant 0 : i32
    %c0_i32_0 = arith.constant 0 : i32
    %c0_i32_1 = arith.constant 0 : i32
    return %c0_i32, %c0_i32_0 : i32, i32
  }
  func.func @transform_5(%arg0: i32) -> (i32, i32) {
    %c0_i32 = arith.constant 0 : i32
    %c0_i32_0 = arith.constant 0 : i32
    %c0_i32_1 = arith.constant 0 : i32
    return %c0_i32, %c0_i32_0 : i32, i32
  }
  func.func @transform_6(%arg0: i32) -> (i32, i32) {
    %c0_i32 = arith.constant 0 : i32
    %c0_i32_0 = arith.constant 0 : i32
    %c0_i32_1 = arith.constant 0 : i32
    return %c0_i32, %c0_i32_0 : i32, i32
  }
  func.func @transform_7(%arg0: i32) -> (i32, i32) {
    %c0_i32 = arith.constant 0 : i32
    %c0_i32_0 = arith.constant 0 : i32
    %c0_i32_1 = arith.constant 0 : i32
    return %c0_i32, %c0_i32_0 : i32, i32
  }
  func.func @transform_8(%arg0: i32) -> (i32, i32) {
    %c0_i32 = arith.constant 0 : i32
    %c0_i32_0 = arith.constant 0 : i32
    %c0_i32_1 = arith.constant 0 : i32
    return %c0_i32, %c0_i32_0 : i32, i32
  }
  func.func @transform_9(%arg0: i32) -> (i32, i32) {
    %c0_i32 = arith.constant 0 : i32
    %c0_i32_0 = arith.constant 0 : i32
    %c0_i32_1 = arith.constant 0 : i32
    return %c0_i32, %c0_i32_0 : i32, i32
  }
  func.func @transform_10(%arg0: i32) -> (i32, i32) {
    %c0_i32 = arith.constant 0 : i32
    %c0_i32_0 = arith.constant 0 : i32
    %c0_i32_1 = arith.constant 0 : i32
    return %c0_i32, %c0_i32_0 : i32, i32
  }
  func.func @transform_11(%arg0: i32) -> (i32, i32) {
    %c0_i32 = arith.constant 0 : i32
    %c0_i32_0 = arith.constant 0 : i32
    %c0_i32_1 = arith.constant 0 : i32
    return %c0_i32, %c0_i32_0 : i32, i32
  }
  func.func @transform_12(%arg0: i32) -> (i32, i32) {
    %c0_i32 = arith.constant 0 : i32
    %c0_i32_0 = arith.constant 0 : i32
    %c0_i32_1 = arith.constant 0 : i32
    return %c0_i32, %c0_i32_0 : i32, i32
  }
  func.func @transform_13(%arg0: i32) -> (i32, i32) {
    %c0_i32 = arith.constant 0 : i32
    %c0_i32_0 = arith.constant 0 : i32
    %c0_i32_1 = arith.constant 0 : i32
    return %c0_i32, %c0_i32_0 : i32, i32
  }
  func.func @transform_14(%arg0: i32) -> (i32, i32) {
    %c0_i32 = arith.constant 0 : i32
    %c0_i32_0 = arith.constant 0 : i32
    return %arg0, %c0_i32 : i32, i32
  }
  func.func @transform_15(%arg0: i32) -> (i32, i32) {
    %c0_i32 = arith.constant 0 : i32
    %c0_i32_0 = arith.constant 0 : i32
    return %arg0, %c0_i32 : i32, i32
  }
}

</mosaic_0001>

<llo_original>
// kernel: tpu_custom_call.1
$region0: #{tpu_custom_call.1}
  #allocation0 [shape = 'u32[]', space=smem, size = 0x4, offset = 0x4, fixed_abs, tag = 'smem constant byte address 0x4 - core index']
  #allocation1 [shape = 'u32[72,128]{1,0:T(1,128)}', space=vmem, size = 0x9000, scoped, tag = 'internal scratch']
  %s0 = inlined_call_operand.hbm [shape: bf16[16,128], index: 0, kind: input, shape index: {}]
  %s1 = inlined_call_operand.hbm [shape: f32[16,128], index: 1, kind: input, shape index: {}]
  %s2 = inlined_call_operand.hbm [shape: bf16[128,512], index: 2, kind: input, shape index: {}]
  %s3 = inlined_call_operand.hbm [shape: f32[1,512], index: 3, kind: input, shape index: {}]
  %s4 = inlined_call_operand.hbm [shape: bf16[512,256], index: 4, kind: input, shape index: {}]
  %s5 = inlined_call_operand.vmem [shape: f32[1,256], index: 5, kind: input, shape index: {}]
  %s6 = inlined_call_operand.hbm [shape: bf16[256,256], index: 6, kind: input, shape index: {}]
  %s7 = inlined_call_operand.hbm [shape: f32[1,256], index: 7, kind: input, shape index: {}]
  %s8 = inlined_call_operand.hbm [shape: bf16[128,256], index: 8, kind: input, shape index: {}]
  %s9 = inlined_call_operand.vmem [shape: f32[1,256], index: 9, kind: input, shape index: {}]
  %s10 = inlined_call_operand.hbm [shape: bf16[256,512], index: 10, kind: input, shape index: {}]
  %s11 = inlined_call_operand.vmem [shape: f32[1,512], index: 11, kind: input, shape index: {}]
  %s12 = inlined_call_operand.hbm [shape: bf16[512,128], index: 12, kind: input, shape index: {}]
  %s13 = inlined_call_operand.vmem [shape: f32[1,128], index: 13, kind: input, shape index: {}]
  %s14 = inlined_call_operand.hbm [shape: f32[16,128], index: 14, kind: output, shape index: {0}]
  %s15 = inlined_call_operand.hbm [shape: f32[16,256], index: 15, kind: output, shape index: {1}]
  %16 = xla_tuple %s14, %s15
  %s17 = sld [smem:[#allocation0]]
  $region114: #{tpu_custom_call.1} parent=0
    _
  %s19 = ssub.s32 1, %s17
  %s20 = scalar_select 0, %s19, %s17
  $region1: #{tpu_custom_call.1} parent=0
    #allocation2 [shape = 'u8[4096]{0}', space=vmem, size = 0x1000, scoped, tag = 'input window, operand 0, single buffered']
    #allocation3 [shape = 's32[1]{0}', space=sflag, size = 0x4, scoped, tag = 'scoped memory for tpu_custom_call.1']
    #allocation4 [shape = 's32[1]{0}', space=sflag, size = 0x4, scoped, tag = 'scoped memory for tpu_custom_call.1']
    #allocation5 [shape = 'u8[8192]{0}', space=vmem, size = 0x2000, scoped, tag = 'input window, operand 1, single buffered']
    #allocation6 [shape = 's32[1]{0}', space=sflag, size = 0x4, scoped, tag = 'scoped memory for tpu_custom_call.1']
    #allocation7 [shape = 'u8[131072]{0}', space=vmem, size = 0x20000, scoped, tag = 'input window, operand 2, single buffered']
    #allocation8 [shape = 'u8[2048]{0}', space=vmem, size = 0x800, scoped, tag = 'input window, operand 3, single buffered']
    #allocation9 [shape = 's32[1]{0}', space=sflag, size = 0x4, scoped, tag = 'scoped memory for tpu_custom_call.1']
    #allocation10 [shape = 'u8[262144]{0}', space=vmem, size = 0x40000, scoped, tag = 'input window, operand 4, single buffered']
    #allocation11 [shape = 'u8[131072]{0}', space=vmem, size = 0x20000, scoped, tag = 'input window, operand 6, single buffered']
    #allocation12 [shape = 's32[1]{0}', space=sflag, size = 0x4, scoped, tag = 'scoped memory for tpu_custom_call.1']
    #allocation13 [shape = 'u8[1024]{0}', space=vmem, size = 0x400, scoped, tag = 'input window, operand 7, single buffered']
    #allocation14 [shape = 'u8[65536]{0}', space=vmem, size = 0x10000, scoped, tag = 'input window, operand 8, single buffered']
    #allocation15 [shape = 's32[1]{0}', space=sflag, size = 0x4, scoped, tag = 'scoped memory for tpu_custom_call.1']
    #allocation16 [shape = 'u8[262144]{0}', space=vmem, size = 0x40000, scoped, tag = 'input window, operand 10, single buffered']
    #allocation17 [shape = 'u8[131072]{0}', space=vmem, size = 0x20000, scoped, tag = 'input window, operand 12, single buffered']
    #allocation18 [shape = 's32[1]{0}', space=sflag, size = 0x4, scoped, tag = 'scoped memory for tpu_custom_call.1']
    #allocation19 [shape = 'u8[8192]{0}', space=vmem, size = 0x2000, scoped, tag = 'output window, operand 0, single buffered']
    #allocation20 [shape = 'u8[16384]{0}', space=vmem, size = 0x4000, scoped, tag = 'output window, operand 1, single buffered']
    #allocation21 [shape = 's32[1]{0}', space=sflag, size = 0x4, scoped, tag = 'scoped memory for tpu_custom_call.1']
    %21 = vsyncpa [#allocation3], 0
    %22 = vsyncpa [#allocation6], 0
    %23 = vsyncpa [#allocation9], 0
    %24 = vsyncpa [#allocation12], 0
    %25 = vsyncpa [#allocation15], 0
    %26 = vsyncpa [#allocation18], 0
    %27 = vsyncpa [#allocation4], 0
    %28 = vsyncpa [#allocation21], 0
    // Predicated region
    $region2: #{tpu_custom_call.1} parent=1 // pred_check
      _
    $region3: #{tpu_custom_call.1} parent=1 // pred_check_branch
      %30 = sbr.rel (0) target = $region5
    $region4: #{tpu_custom_call.1} parent=1 // pred_region
      %32 = vsyncadd [#allocation3], 0
      %s33 = sshll.u32 %s0, 4
      %s34 = int_to_ptr.hbm [resolvable:$true] %s33
      %s35 = sshll.u32 [#allocation2], 4
      %s36 = int_to_ptr.vmem [resolvable:$true] %s35
      %41 = dma.hbm_to_vmem [thread:$0]  %s34, 128, %s36, [#allocation3], 64, 64, 4
    $region5: #{tpu_custom_call.1} parent=1 // pred_fallthru
      _
    // Predicated region
    $region6: #{tpu_custom_call.1} parent=1 // pred_check
      _
    $region7: #{tpu_custom_call.1} parent=1 // pred_check_branch
      %43 = sbr.rel (0) target = $region9
    $region8: #{tpu_custom_call.1} parent=1 // pred_region
      %45 = vsyncadd [#allocation6], 0
      %s46 = sshll.u32 %s1, 4
      %s47 = int_to_ptr.hbm [resolvable:$true] %s46
      %s48 = sshll.u32 [#allocation5], 4
      %s49 = int_to_ptr.vmem [resolvable:$true] %s48
      %54 = dma.hbm_to_vmem [thread:$0]  %s47, 256, %s49, [#allocation6], 128, 128, 8
    $region9: #{tpu_custom_call.1} parent=1 // pred_fallthru
      _
    // Predicated region
    $region10: #{tpu_custom_call.1} parent=1 // pred_check
      _
    $region11: #{tpu_custom_call.1} parent=1 // pred_check_branch
      %56 = sbr.rel (0) target = $region13
    $region12: #{tpu_custom_call.1} parent=1 // pred_region
      %58 = vsyncadd [#allocation6], 0
      %s59 = sshll.u32 %s2, 4
      %s60 = int_to_ptr.hbm [resolvable:$true] %s59
      %s61 = sshll.u32 [#allocation7], 4
      %s62 = int_to_ptr.vmem [resolvable:$true] %s61
      %67 = dma.hbm_to_vmem [thread:$0]  %s60, 4096, %s62, [#allocation6], 256, 256, 16
    $region13: #{tpu_custom_call.1} parent=1 // pred_fallthru
      _
    // Predicated region
    $region14: #{tpu_custom_call.1} parent=1 // pred_check
      _
    $region15: #{tpu_custom_call.1} parent=1 // pred_check_branch
      %69 = sbr.rel (0) target = $region17
    $region16: #{tpu_custom_call.1} parent=1 // pred_region
      %71 = vsyncadd [#allocation9], 0
      %s73 = sshll.u32 %s3, 4
      %s74 = int_to_ptr.hbm [resolvable:$true] %s73
      %s75 = sshll.u32 [#allocation8], 4
      %s76 = int_to_ptr.vmem [resolvable:$true] %s75
      %78 = dma.hbm_to_vmem [thread:$0]  %s74, 64, %s76, [#allocation9]
    $region17: #{tpu_custom_call.1} parent=1 // pred_fallthru
      _
    // Predicated region
    $region18: #{tpu_custom_call.1} parent=1 // pred_check
      _
    $region19: #{tpu_custom_call.1} parent=1 // pred_check_branch
      %80 = sbr.rel (0) target = $region21
    $region20: #{tpu_custom_call.1} parent=1 // pred_region
      %82 = vsyncadd [#allocation9], 0
      %s83 = sshll.u32 %s4, 4
      %s84 = int_to_ptr.hbm [resolvable:$true] %s83
      %s85 = sshll.u32 [#allocation10], 4
      %s86 = int_to_ptr.vmem [resolvable:$true] %s85
      %91 = dma.hbm_to_vmem [thread:$0]  %s84, 8192, %s86, [#allocation9], 128, 128, 8
    $region21: #{tpu_custom_call.1} parent=1 // pred_fallthru
      _
    // Predicated region
    $region22: #{tpu_custom_call.1} parent=1 // pred_check
      _
    $region23: #{tpu_custom_call.1} parent=1 // pred_check_branch
      %93 = sbr.rel (0) target = $region25
    $region24: #{tpu_custom_call.1} parent=1 // pred_region
      _
    $region25: #{tpu_custom_call.1} parent=1 // pred_fallthru
      _
    // Predicated region
    $region26: #{tpu_custom_call.1} parent=1 // pred_check
      _
    $region27: #{tpu_custom_call.1} parent=1 // pred_check_branch
      %95 = sbr.rel (0) target = $region29
    $region28: #{tpu_custom_call.1} parent=1 // pred_region
      %97 = vsyncadd [#allocation12], 0
      %s98 = sshll.u32 %s6, 4
      %s99 = int_to_ptr.hbm [resolvable:$true] %s98
      %s100 = sshll.u32 [#allocation11], 4
      %s101 = int_to_ptr.vmem [resolvable:$true] %s100
      %106 = dma.hbm_to_vmem [thread:$0]  %s99, 4096, %s101, [#allocation12], 128, 128, 8
    $region29: #{tpu_custom_call.1} parent=1 // pred_fallthru
      _
    // Predicated region
    $region30: #{tpu_custom_call.1} parent=1 // pred_check
      _
    $region31: #{tpu_custom_call.1} parent=1 // pred_check_branch
      %108 = sbr.rel (0) target = $region33
    $region32: #{tpu_custom_call.1} parent=1 // pred_region
      %110 = vsyncadd [#allocation12], 0
      %s112 = sshll.u32 %s7, 4
      %s113 = int_to_ptr.hbm [resolvable:$true] %s112
      %s114 = sshll.u32 [#allocation13], 4
      %s115 = int_to_ptr.vmem [resolvable:$true] %s114
      %117 = dma.hbm_to_vmem [thread:$0]  %s113, 32, %s115, [#allocation12]
    $region33: #{tpu_custom_call.1} parent=1 // pred_fallthru
      _
    // Predicated region
    $region34: #{tpu_custom_call.1} parent=1 // pred_check
      _
    $region35: #{tpu_custom_call.1} parent=1 // pred_check_branch
      %119 = sbr.rel (0) target = $region37
    $region36: #{tpu_custom_call.1} parent=1 // pred_region
      %121 = vsyncadd [#allocation15], 0
      %s122 = sshll.u32 %s8, 4
      %s123 = int_to_ptr.hbm [resolvable:$true] %s122
      %s124 = sshll.u32 [#allocation14], 4
      %s125 = int_to_ptr.vmem [resolvable:$true] %s124
      %130 = dma.hbm_to_vmem [thread:$0]  %s123, 2048, %s125, [#allocation15], 128, 128, 8
    $region37: #{tpu_custom_call.1} parent=1 // pred_fallthru
      _
    // Predicated region
    $region38: #{tpu_custom_call.1} parent=1 // pred_check
      _
    $region39: #{tpu_custom_call.1} parent=1 // pred_check_branch
      %132 = sbr.rel (0) target = $region41
    $region40: #{tpu_custom_call.1} parent=1 // pred_region
      _
    $region41: #{tpu_custom_call.1} parent=1 // pred_fallthru
      _
    // Predicated region
    $region42: #{tpu_custom_call.1} parent=1 // pred_check
      _
    $region43: #{tpu_custom_call.1} parent=1 // pred_check_branch
      %134 = sbr.rel (0) target = $region45
    $region44: #{tpu_custom_call.1} parent=1 // pred_region
      %136 = vsyncadd [#allocation15], 0
      %s137 = sshll.u32 %s10, 4
      %s138 = int_to_ptr.hbm [resolvable:$true] %s137
      %s139 = sshll.u32 [#allocation16], 4
      %s140 = int_to_ptr.vmem [resolvable:$true] %s139
      %145 = dma.hbm_to_vmem [thread:$0]  %s138, 8192, %s140, [#allocation15], 256, 256, 16
    $region45: #{tpu_custom_call.1} parent=1 // pred_fallthru
      _
    // Predicated region
    $region46: #{tpu_custom_call.1} parent=1 // pred_check
      _
    $region47: #{tpu_custom_call.1} parent=1 // pred_check_branch
      %147 = sbr.rel (0) target = $region49
    $region48: #{tpu_custom_call.1} parent=1 // pred_region
      _
    $region49: #{tpu_custom_call.1} parent=1 // pred_fallthru
      _
    // Predicated region
    $region50: #{tpu_custom_call.1} parent=1 // pred_check
      _
    $region51: #{tpu_custom_call.1} parent=1 // pred_check_branch
      %149 = sbr.rel (0) target = $region53
    $region52: #{tpu_custom_call.1} parent=1 // pred_region
      %151 = vsyncadd [#allocation18], 0
      %s152 = sshll.u32 %s12, 4
      %s153 = int_to_ptr.hbm [resolvable:$true] %s152
      %s154 = sshll.u32 [#allocation17], 4
      %s155 = int_to_ptr.vmem [resolvable:$true] %s154
      %160 = dma.hbm_to_vmem [thread:$0]  %s153, 4096, %s155, [#allocation18], 64, 64, 4
    $region53: #{tpu_custom_call.1} parent=1 // pred_fallthru
      _
    // Predicated region
    $region54: #{tpu_custom_call.1} parent=1 // pred_check
      _
    $region55: #{tpu_custom_call.1} parent=1 // pred_check_branch
      %162 = sbr.rel (0) target = $region57
    $region56: #{tpu_custom_call.1} parent=1 // pred_region
      _
    $region57: #{tpu_custom_call.1} parent=1 // pred_fallthru
      _
    // Predicated region
    $region58: #{tpu_custom_call.1} parent=1 // pred_check
      _
    $region59: #{tpu_custom_call.1} parent=1 // pred_check_branch
      %164 = sbr.rel (0) target = $region61
    $region60: #{tpu_custom_call.1} parent=1 // pred_region
      %166 = dma.done [#allocation3], 128
    $region61: #{tpu_custom_call.1} parent=1 // pred_fallthru
      _
    // Predicated region
    $region62: #{tpu_custom_call.1} parent=1 // pred_check
      _
    $region63: #{tpu_custom_call.1} parent=1 // pred_check_branch
      %168 = sbr.rel (0) target = $region65
    $region64: #{tpu_custom_call.1} parent=1 // pred_region
      %170 = dma.done [#allocation6], 256
    $region65: #{tpu_custom_call.1} parent=1 // pred_fallthru
      _
    // Predicated region
    $region66: #{tpu_custom_call.1} parent=1 // pred_check
      _
    $region67: #{tpu_custom_call.1} parent=1 // pred_check_branch
      %172 = sbr.rel (0) target = $region69
    $region68: #{tpu_custom_call.1} parent=1 // pred_region
      %174 = dma.done [#allocation6], 4096
    $region69: #{tpu_custom_call.1} parent=1 // pred_fallthru
      _
    // Predicated region
    $region70: #{tpu_custom_call.1} parent=1 // pred_check
      _
    $region71: #{tpu_custom_call.1} parent=1 // pred_check_branch
      %176 = sbr.rel (0) target = $region73
    $region72: #{tpu_custom_call.1} parent=1 // pred_region
      %178 = dma.done [#allocation9], 64
    $region73: #{tpu_custom_call.1} parent=1 // pred_fallthru
      _
    // Predicated region
    $region74: #{tpu_custom_call.1} parent=1 // pred_check
      _
    $region75: #{tpu_custom_call.1} parent=1 // pred_check_branch
      %180 = sbr.rel (0) target = $region77
    $region76: #{tpu_custom_call.1} parent=1 // pred_region
      %182 = dma.done [#allocation9], 8192
    $region77: #{tpu_custom_call.1} parent=1 // pred_fallthru
      _
    // Predicated region
    $region78: #{tpu_custom_call.1} parent=1 // pred_check
      _
    $region79: #{tpu_custom_call.1} parent=1 // pred_check_branch
      %184 = sbr.rel (0) target = $region81
    $region80: #{tpu_custom_call.1} parent=1 // pred_region
      %186 = dma.done [#allocation12], 4096
    $region81: #{tpu_custom_call.1} parent=1 // pred_fallthru
      _
    // Predicated region
    $region82: #{tpu_custom_call.1} parent=1 // pred_check
      _
    $region83: #{tpu_custom_call.1} parent=1 // pred_check_branch
      %188 = sbr.rel (0) target = $region85
    $region84: #{tpu_custom_call.1} parent=1 // pred_region
      %190 = dma.done [#allocation12], 32
    $region85: #{tpu_custom_call.1} parent=1 // pred_fallthru
      _
    // Predicated region
    $region86: #{tpu_custom_call.1} parent=1 // pred_check
      _
    $region87: #{tpu_custom_call.1} parent=1 // pred_check_branch
      %192 = sbr.rel (0) target = $region89
    $region88: #{tpu_custom_call.1} parent=1 // pred_region
      %194 = dma.done [#allocation15], 2048
    $region89: #{tpu_custom_call.1} parent=1 // pred_fallthru
      _
    // Predicated region
    $region90: #{tpu_custom_call.1} parent=1 // pred_check
      _
    $region91: #{tpu_custom_call.1} parent=1 // pred_check_branch
      %196 = sbr.rel (0) target = $region93
    $region92: #{tpu_custom_call.1} parent=1 // pred_region
      %198 = dma.done [#allocation15], 8192
    $region93: #{tpu_custom_call.1} parent=1 // pred_fallthru
      _
    // Predicated region
    $region94: #{tpu_custom_call.1} parent=1 // pred_check
      _
    $region95: #{tpu_custom_call.1} parent=1 // pred_check_branch
      %200 = sbr.rel (0) target = $region97
    $region96: #{tpu_custom_call.1} parent=1 // pred_region
      %202 = dma.done [#allocation18], 4096
    $region97: #{tpu_custom_call.1} parent=1 // pred_fallthru
      _
    %v203 = vld [vmem:[#allocation2] sm:$0xf]
    %v204 = vld [vmem:[#allocation2 + $0x4] sm:$0xf]
    %v205 = vld [vmem:[#allocation7] sm:$0xff]
    %v206 = vld [vmem:[#allocation7 + $0x8] sm:$0xff]
    %v207 = vld [vmem:[#allocation7 + $0x10] sm:$0xff]
    %v208 = vld [vmem:[#allocation7 + $0x18] sm:$0xff]
    %v209 = vld [vmem:[#allocation7 + $0x20] sm:$0xff]
    %v210 = vld [vmem:[#allocation7 + $0x28] sm:$0xff]
    %v211 = vld [vmem:[#allocation7 + $0x30] sm:$0xff]
    %v212 = vld [vmem:[#allocation7 + $0x38] sm:$0xff]
    %v213 = vld [vmem:[#allocation7 + $0x40] sm:$0xff]
    %v214 = vld [vmem:[#allocation7 + $0x48] sm:$0xff]
    %v215 = vld [vmem:[#allocation7 + $0x50] sm:$0xff]
    %v216 = vld [vmem:[#allocation7 + $0x58] sm:$0xff]
    %v217 = vld [vmem:[#allocation7 + $0x60] sm:$0xff]
    %v218 = vld [vmem:[#allocation7 + $0x68] sm:$0xff]
    %v219 = vld [vmem:[#allocation7 + $0x70] sm:$0xff]
    %v220 = vld [vmem:[#allocation7 + $0x78] sm:$0xff]
    %v221 = vld [vmem:[#allocation7 + $0x80] sm:$0xff]
    %v222 = vld [vmem:[#allocation7 + $0x88] sm:$0xff]
    %v223 = vld [vmem:[#allocation7 + $0x90] sm:$0xff]
    %v224 = vld [vmem:[#allocation7 + $0x98] sm:$0xff]
    %v225 = vld [vmem:[#allocation7 + $0xa0] sm:$0xff]
    %v226 = vld [vmem:[#allocation7 + $0xa8] sm:$0xff]
    %v227 = vld [vmem:[#allocation7 + $0xb0] sm:$0xff]
    %v228 = vld [vmem:[#allocation7 + $0xb8] sm:$0xff]
    %v229 = vld [vmem:[#allocation7 + $0xc0] sm:$0xff]
    %v230 = vld [vmem:[#allocation7 + $0xc8] sm:$0xff]
    %v231 = vld [vmem:[#allocation7 + $0xd0] sm:$0xff]
    %v232 = vld [vmem:[#allocation7 + $0xd8] sm:$0xff]
    %v233 = vld [vmem:[#allocation7 + $0xe0] sm:$0xff]
    %v234 = vld [vmem:[#allocation7 + $0xe8] sm:$0xff]
    %v235 = vld [vmem:[#allocation7 + $0xf0] sm:$0xff]
    %v236 = vld [vmem:[#allocation7 + $0xf8] sm:$0xff]
    %v237 = vld [vmem:[#allocation8] sm:$0xf]
    %v239 = vperm.slane %v237, 0
    %v240 = vperm.slane %v237, 1
    %v241 = vperm.slane %v237, 2
    %v242 = vperm.slane %v237, 3
    %v249 = vunpack.c.l.b16 %v203
    %v250 = vunpack.c.l.b16 %v204
    %v251 = vpack.c.b16 %v250, %v249
    %v285 = vunpack.c.l.b16 %v205
    %v286 = vunpack.c.h.b16 %v205
    %v287 = vunpack.c.l.b16 %v206
    %v288 = vunpack.c.h.b16 %v206
    %v289 = vunpack.c.l.b16 %v207
    %v290 = vunpack.c.h.b16 %v207
    %v291 = vunpack.c.l.b16 %v208
    %v292 = vunpack.c.h.b16 %v208
    %v293 = vunpack.c.l.b16 %v209
    %v294 = vunpack.c.h.b16 %v209
    %v295 = vunpack.c.l.b16 %v210
    %v296 = vunpack.c.h.b16 %v210
    %v297 = vunpack.c.l.b16 %v211
    %v298 = vunpack.c.h.b16 %v211
    %v299 = vunpack.c.l.b16 %v212
    %v300 = vunpack.c.h.b16 %v212
    %v301 = vunpack.c.l.b16 %v213
    %v302 = vunpack.c.h.b16 %v213
    %v303 = vunpack.c.l.b16 %v214
    %v304 = vunpack.c.h.b16 %v214
    %v305 = vunpack.c.l.b16 %v215
    %v306 = vunpack.c.h.b16 %v215
    %v307 = vunpack.c.l.b16 %v216
    %v308 = vunpack.c.h.b16 %v216
    %v309 = vunpack.c.l.b16 %v217
    %v310 = vunpack.c.h.b16 %v217
    %v311 = vunpack.c.l.b16 %v218
    %v312 = vunpack.c.h.b16 %v218
    %v313 = vunpack.c.l.b16 %v219
    %v314 = vunpack.c.h.b16 %v219
    %v315 = vunpack.c.l.b16 %v220
    %v316 = vunpack.c.h.b16 %v220
    %v317 = vunpack.c.l.b16 %v221
    %v318 = vunpack.c.h.b16 %v221
    %v319 = vunpack.c.l.b16 %v222
    %v320 = vunpack.c.h.b16 %v222
    %v321 = vunpack.c.l.b16 %v223
    %v322 = vunpack.c.h.b16 %v223
    %v323 = vunpack.c.l.b16 %v224
    %v324 = vunpack.c.h.b16 %v224
    %v325 = vunpack.c.l.b16 %v225
    %v326 = vunpack.c.h.b16 %v225
    %v327 = vunpack.c.l.b16 %v226
    %v328 = vunpack.c.h.b16 %v226
    %v329 = vunpack.c.l.b16 %v227
    %v330 = vunpack.c.h.b16 %v227
    %v331 = vunpack.c.l.b16 %v228
    %v332 = vunpack.c.h.b16 %v228
    %v333 = vunpack.c.l.b16 %v229
    %v334 = vunpack.c.h.b16 %v229
    %v335 = vunpack.c.l.b16 %v230
    %v336 = vunpack.c.h.b16 %v230
    %v337 = vunpack.c.l.b16 %v231
    %v338 = vunpack.c.h.b16 %v231
    %v339 = vunpack.c.l.b16 %v232
    %v340 = vunpack.c.h.b16 %v232
    %v341 = vunpack.c.l.b16 %v233
    %v342 = vunpack.c.h.b16 %v233
    %v343 = vunpack.c.l.b16 %v234
    %v344 = vunpack.c.h.b16 %v234
    %v345 = vunpack.c.l.b16 %v235
    %v346 = vunpack.c.h.b16 %v235
    %v347 = vunpack.c.l.b16 %v236
    %v348 = vunpack.c.h.b16 %v236
    %v349 = vpack.c.b16 %v289, %v285
    %v350 = vpack.c.b16 %v290, %v286
    %v351 = vpack.c.b16 %v291, %v287
    %v352 = vpack.c.b16 %v292, %v288
    %v353 = vpack.c.b16 %v297, %v293
    %v354 = vpack.c.b16 %v298, %v294
    %v355 = vpack.c.b16 %v299, %v295
    %v356 = vpack.c.b16 %v300, %v296
    %v357 = vpack.c.b16 %v305, %v301
    %v358 = vpack.c.b16 %v306, %v302
    %v359 = vpack.c.b16 %v307, %v303
    %v360 = vpack.c.b16 %v308, %v304
    %v361 = vpack.c.b16 %v313, %v309
    %v362 = vpack.c.b16 %v314, %v310
    %v363 = vpack.c.b16 %v315, %v311
    %v364 = vpack.c.b16 %v316, %v312
    %v365 = vpack.c.b16 %v321, %v317
    %v366 = vpack.c.b16 %v322, %v318
    %v367 = vpack.c.b16 %v323, %v319
    %v368 = vpack.c.b16 %v324, %v320
    %v369 = vpack.c.b16 %v329, %v325
    %v370 = vpack.c.b16 %v330, %v326
    %v371 = vpack.c.b16 %v331, %v327
    %v372 = vpack.c.b16 %v332, %v328
    %v373 = vpack.c.b16 %v337, %v333
    %v374 = vpack.c.b16 %v338, %v334
    %v375 = vpack.c.b16 %v339, %v335
    %v376 = vpack.c.b16 %v340, %v336
    %v377 = vpack.c.b16 %v345, %v341
    %v378 = vpack.c.b16 %v346, %v342
    %v379 = vpack.c.b16 %v347, %v343
    %v380 = vpack.c.b16 %v348, %v344
    %413 = vmatpush.bf16.msra.mxu0 %v377
    %414 = vmatpush.bf16.msra.mxu0 %v373
    %415 = vmatpush.bf16.msra.mxu0 %v369
    %416 = vmatpush.bf16.msra.mxu0 %v365
    %417 = vmatpush.bf16.msra.mxu0 %v361
    %418 = vmatpush.bf16.msra.mxu0 %v357
    %419 = vmatpush.bf16.msra.mxu0 %v353
    %420 = vmatpush.bf16.msra.mxu0 %v349
    %421 = vmatmul.bf16.gmra.mxu0 %v251
    %v422 = vpop.f32.mrf.mxu0
    %v423 = vadd.f32 %v239, %v422
    %v424 = vpop.f32.mrf.mxu0
    %v425 = vadd.f32 %v239, %v424
    %426 = vdwg.mxu0
    %427 = vmatpush.bf16.msra.mxu0 %v378
    %428 = vmatpush.bf16.msra.mxu0 %v374
    %429 = vmatpush.bf16.msra.mxu0 %v370
    %430 = vmatpush.bf16.msra.mxu0 %v366
    %431 = vmatpush.bf16.msra.mxu0 %v362
    %432 = vmatpush.bf16.msra.mxu0 %v358
    %433 = vmatpush.bf16.msra.mxu0 %v354
    %434 = vmatpush.bf16.msra.mxu0 %v350
    %435 = vmatmul.bf16.gmra.mxu0 %v251
    %v436 = vpop.f32.mrf.mxu0
    %v437 = vadd.f32 %v240, %v436
    %v438 = vpop.f32.mrf.mxu0
    %v439 = vadd.f32 %v240, %v438
    %440 = vdwg.mxu0
    %441 = vmatpush.bf16.msra.mxu0 %v379
    %442 = vmatpush.bf16.msra.mxu0 %v375
    %443 = vmatpush.bf16.msra.mxu0 %v371
    %444 = vmatpush.bf16.msra.mxu0 %v367
    %445 = vmatpush.bf16.msra.mxu0 %v363
    %446 = vmatpush.bf16.msra.mxu0 %v359
    %447 = vmatpush.bf16.msra.mxu0 %v355
    %448 = vmatpush.bf16.msra.mxu0 %v351
    %449 = vmatmul.bf16.gmra.mxu0 %v251
    %v450 = vpop.f32.mrf.mxu0
    %v451 = vadd.f32 %v241, %v450
    %v452 = vpop.f32.mrf.mxu0
    %v453 = vadd.f32 %v241, %v452
    %454 = vdwg.mxu0
    %455 = vmatpush.bf16.msra.mxu0 %v380
    %456 = vmatpush.bf16.msra.mxu0 %v376
    %457 = vmatpush.bf16.msra.mxu0 %v372
    %458 = vmatpush.bf16.msra.mxu0 %v368
    %459 = vmatpush.bf16.msra.mxu0 %v364
    %460 = vmatpush.bf16.msra.mxu0 %v360
    %461 = vmatpush.bf16.msra.mxu0 %v356
    %462 = vmatpush.bf16.msra.mxu0 %v352
    %463 = vmatmul.bf16.gmra.mxu0 %v251
    %v464 = vpop.f32.mrf.mxu0
    %v465 = vadd.f32 %v242, %v464
    %v466 = vpop.f32.mrf.mxu0
    %v467 = vadd.f32 %v242, %v466
    %468 = vdwg.mxu0
    %v469 = vmax.f32 %v423, 0.0
    %v470 = vmax.f32 %v437, 0.0
    %v471 = vmax.f32 %v451, 0.0
    %v472 = vmax.f32 %v465, 0.0
    %v473 = vmax.f32 %v425, 0.0
    %v474 = vmax.f32 %v439, 0.0
    %v475 = vmax.f32 %v453, 0.0
    %v476 = vmax.f32 %v467, 0.0
    %v477 = vpack.c.bf16 %v473, %v469
    %v478 = vpack.c.bf16 %v474, %v470
    %v479 = vpack.c.bf16 %v475, %v471
    %v480 = vpack.c.bf16 %v476, %v472
    %v481 = vld [vmem:[#allocation10] sm:$0xff]
    %v482 = vld [vmem:[#allocation10 + $0x8] sm:$0xff]
    %v483 = vld [vmem:[#allocation10 + $0x10] sm:$0xff]
    %v484 = vld [vmem:[#allocation10 + $0x18] sm:$0xff]
    %v485 = vld [vmem:[#allocation10 + $0x20] sm:$0xff]
    %v486 = vld [vmem:[#allocation10 + $0x28] sm:$0xff]
    %v487 = vld [vmem:[#allocation10 + $0x30] sm:$0xff]
    %v488 = vld [vmem:[#allocation10 + $0x38] sm:$0xff]
    %v489 = vld [vmem:[#allocation10 + $0x40] sm:$0xff]
    %v490 = vld [vmem:[#allocation10 + $0x48] sm:$0xff]
    %v491 = vld [vmem:[#allocation10 + $0x50] sm:$0xff]
    %v492 = vld [vmem:[#allocation10 + $0x58] sm:$0xff]
    %v493 = vld [vmem:[#allocation10 + $0x60] sm:$0xff]
    %v494 = vld [vmem:[#allocation10 + $0x68] sm:$0xff]
    %v495 = vld [vmem:[#allocation10 + $0x70] sm:$0xff]
    %v496 = vld [vmem:[#allocation10 + $0x78] sm:$0xff]
    %v497 = vld [vmem:[#allocation10 + $0x80] sm:$0xff]
    %v498 = vld [vmem:[#allocation10 + $0x88] sm:$0xff]
    %v499 = vld [vmem:[#allocation10 + $0x90] sm:$0xff]
    %v500 = vld [vmem:[#allocation10 + $0x98] sm:$0xff]
    %v501 = vld [vmem:[#allocation10 + $0xa0] sm:$0xff]
    %v502 = vld [vmem:[#allocation10 + $0xa8] sm:$0xff]
    %v503 = vld [vmem:[#allocation10 + $0xb0] sm:$0xff]
    %v504 = vld [vmem:[#allocation10 + $0xb8] sm:$0xff]
    %v505 = vld [vmem:[#allocation10 + $0xc0] sm:$0xff]
    %v506 = vld [vmem:[#allocation10 + $0xc8] sm:$0xff]
    %v507 = vld [vmem:[#allocation10 + $0xd0] sm:$0xff]
    %v508 = vld [vmem:[#allocation10 + $0xd8] sm:$0xff]
    %v509 = vld [vmem:[#allocation10 + $0xe0] sm:$0xff]
    %v510 = vld [vmem:[#allocation10 + $0xe8] sm:$0xff]
    %v511 = vld [vmem:[#allocation10 + $0xf0] sm:$0xff]
    %v512 = vld [vmem:[#allocation10 + $0xf8] sm:$0xff]
    %v513 = vld [vmem:[#allocation10 + $0x100] sm:$0xff]
    %v514 = vld [vmem:[#allocation10 + $0x108] sm:$0xff]
    %v515 = vld [vmem:[#allocation10 + $0x110] sm:$0xff]
    %v516 = vld [vmem:[#allocation10 + $0x118] sm:$0xff]
    %v517 = vld [vmem:[#allocation10 + $0x120] sm:$0xff]
    %v518 = vld [vmem:[#allocation10 + $0x128] sm:$0xff]
    %v519 = vld [vmem:[#allocation10 + $0x130] sm:$0xff]
    %v520 = vld [vmem:[#allocation10 + $0x138] sm:$0xff]
    %v521 = vld [vmem:[#allocation10 + $0x140] sm:$0xff]
    %v522 = vld [vmem:[#allocation10 + $0x148] sm:$0xff]
    %v523 = vld [vmem:[#allocation10 + $0x150] sm:$0xff]
    %v524 = vld [vmem:[#allocation10 + $0x158] sm:$0xff]
    %v525 = vld [vmem:[#allocation10 + $0x160] sm:$0xff]
    %v526 = vld [vmem:[#allocation10 + $0x168] sm:$0xff]
    %v527 = vld [vmem:[#allocation10 + $0x170] sm:$0xff]
    %v528 = vld [vmem:[#allocation10 + $0x178] sm:$0xff]
    %v529 = vld [vmem:[#allocation10 + $0x180] sm:$0xff]
    %v530 = vld [vmem:[#allocation10 + $0x188] sm:$0xff]
    %v531 = vld [vmem:[#allocation10 + $0x190] sm:$0xff]
    %v532 = vld [vmem:[#allocation10 + $0x198] sm:$0xff]
    %v533 = vld [vmem:[#allocation10 + $0x1a0] sm:$0xff]
    %v534 = vld [vmem:[#allocation10 + $0x1a8] sm:$0xff]
    %v535 = vld [vmem:[#allocation10 + $0x1b0] sm:$0xff]
    %v536 = vld [vmem:[#allocation10 + $0x1b8] sm:$0xff]
    %v537 = vld [vmem:[#allocation10 + $0x1c0] sm:$0xff]
    %v538 = vld [vmem:[#allocation10 + $0x1c8] sm:$0xff]
    %v539 = vld [vmem:[#allocation10 + $0x1d0] sm:$0xff]
    %v540 = vld [vmem:[#allocation10 + $0x1d8] sm:$0xff]
    %v541 = vld [vmem:[#allocation10 + $0x1e0] sm:$0xff]
    %v542 = vld [vmem:[#allocation10 + $0x1e8] sm:$0xff]
    %v543 = vld [vmem:[#allocation10 + $0x1f0] sm:$0xff]
    %v544 = vld [vmem:[#allocation10 + $0x1f8] sm:$0xff]
    %v545 = vld [vmem:[%s5] sm:$0x3]
    %v547 = vperm.slane %v545, 0
    %v548 = vperm.slane %v545, 1
    %v615 = vunpack.c.l.b16 %v481
    %v616 = vunpack.c.h.b16 %v481
    %v617 = vunpack.c.l.b16 %v482
    %v618 = vunpack.c.h.b16 %v482
    %v619 = vunpack.c.l.b16 %v483
    %v620 = vunpack.c.h.b16 %v483
    %v621 = vunpack.c.l.b16 %v484
    %v622 = vunpack.c.h.b16 %v484
    %v623 = vunpack.c.l.b16 %v485
    %v624 = vunpack.c.h.b16 %v485
    %v625 = vunpack.c.l.b16 %v486
    %v626 = vunpack.c.h.b16 %v486
    %v627 = vunpack.c.l.b16 %v487
    %v628 = vunpack.c.h.b16 %v487
    %v629 = vunpack.c.l.b16 %v488
    %v630 = vunpack.c.h.b16 %v488
    %v631 = vunpack.c.l.b16 %v489
    %v632 = vunpack.c.h.b16 %v489
    %v633 = vunpack.c.l.b16 %v490
    %v634 = vunpack.c.h.b16 %v490
    %v635 = vunpack.c.l.b16 %v491
    %v636 = vunpack.c.h.b16 %v491
    %v637 = vunpack.c.l.b16 %v492
    %v638 = vunpack.c.h.b16 %v492
    %v639 = vunpack.c.l.b16 %v493
    %v640 = vunpack.c.h.b16 %v493
    %v641 = vunpack.c.l.b16 %v494
    %v642 = vunpack.c.h.b16 %v494
    %v643 = vunpack.c.l.b16 %v495
    %v644 = vunpack.c.h.b16 %v495
    %v645 = vunpack.c.l.b16 %v496
    %v646 = vunpack.c.h.b16 %v496
    %v647 = vunpack.c.l.b16 %v497
    %v648 = vunpack.c.h.b16 %v497
    %v649 = vunpack.c.l.b16 %v498
    %v650 = vunpack.c.h.b16 %v498
    %v651 = vunpack.c.l.b16 %v499
    %v652 = vunpack.c.h.b16 %v499
    %v653 = vunpack.c.l.b16 %v500
    %v654 = vunpack.c.h.b16 %v500
    %v655 = vunpack.c.l.b16 %v501
    %v656 = vunpack.c.h.b16 %v501
    %v657 = vunpack.c.l.b16 %v502
    %v658 = vunpack.c.h.b16 %v502
    %v659 = vunpack.c.l.b16 %v503
    %v660 = vunpack.c.h.b16 %v503
    %v661 = vunpack.c.l.b16 %v504
    %v662 = vunpack.c.h.b16 %v504
    %v663 = vunpack.c.l.b16 %v505
    %v664 = vunpack.c.h.b16 %v505
    %v665 = vunpack.c.l.b16 %v506
    %v666 = vunpack.c.h.b16 %v506
    %v667 = vunpack.c.l.b16 %v507
    %v668 = vunpack.c.h.b16 %v507
    %v669 = vunpack.c.l.b16 %v508
    %v670 = vunpack.c.h.b16 %v508
    %v671 = vunpack.c.l.b16 %v509
    %v672 = vunpack.c.h.b16 %v509
    %v673 = vunpack.c.l.b16 %v510
    %v674 = vunpack.c.h.b16 %v510
    %v675 = vunpack.c.l.b16 %v511
    %v676 = vunpack.c.h.b16 %v511
    %v677 = vunpack.c.l.b16 %v512
    %v678 = vunpack.c.h.b16 %v512
    %v679 = vunpack.c.l.b16 %v513
    %v680 = vunpack.c.h.b16 %v513
    %v681 = vunpack.c.l.b16 %v514
    %v682 = vunpack.c.h.b16 %v514
    %v683 = vunpack.c.l.b16 %v515
    %v684 = vunpack.c.h.b16 %v515
    %v685 = vunpack.c.l.b16 %v516
    %v686 = vunpack.c.h.b16 %v516
    %v687 = vunpack.c.l.b16 %v517
    %v688 = vunpack.c.h.b16 %v517
    %v689 = vunpack.c.l.b16 %v518
    %v690 = vunpack.c.h.b16 %v518
    %v691 = vunpack.c.l.b16 %v519
    %v692 = vunpack.c.h.b16 %v519
    %v693 = vunpack.c.l.b16 %v520
    %v694 = vunpack.c.h.b16 %v520
    %v695 = vunpack.c.l.b16 %v521
    %v696 = vunpack.c.h.b16 %v521
    %v697 = vunpack.c.l.b16 %v522
    %v698 = vunpack.c.h.b16 %v522
    %v699 = vunpack.c.l.b16 %v523
    %v700 = vunpack.c.h.b16 %v523
    %v701 = vunpack.c.l.b16 %v524
    %v702 = vunpack.c.h.b16 %v524
    %v703 = vunpack.c.l.b16 %v525
    %v704 = vunpack.c.h.b16 %v525
    %v705 = vunpack.c.l.b16 %v526
    %v706 = vunpack.c.h.b16 %v526
    %v707 = vunpack.c.l.b16 %v527
    %v708 = vunpack.c.h.b16 %v527
    %v709 = vunpack.c.l.b16 %v528
    %v710 = vunpack.c.h.b16 %v528
    %v711 = vunpack.c.l.b16 %v529
    %v712 = vunpack.c.h.b16 %v529
    %v713 = vunpack.c.l.b16 %v530
    %v714 = vunpack.c.h.b16 %v530
    %v715 = vunpack.c.l.b16 %v531
    %v716 = vunpack.c.h.b16 %v531
    %v717 = vunpack.c.l.b16 %v532
    %v718 = vunpack.c.h.b16 %v532
    %v719 = vunpack.c.l.b16 %v533
    %v720 = vunpack.c.h.b16 %v533
    %v721 = vunpack.c.l.b16 %v534
    %v722 = vunpack.c.h.b16 %v534
    %v723 = vunpack.c.l.b16 %v535
    %v724 = vunpack.c.h.b16 %v535
    %v725 = vunpack.c.l.b16 %v536
    %v726 = vunpack.c.h.b16 %v536
    %v727 = vunpack.c.l.b16 %v537
    %v728 = vunpack.c.h.b16 %v537
    %v729 = vunpack.c.l.b16 %v538
    %v730 = vunpack.c.h.b16 %v538
    %v731 = vunpack.c.l.b16 %v539
    %v732 = vunpack.c.h.b16 %v539
    %v733 = vunpack.c.l.b16 %v540
    %v734 = vunpack.c.h.b16 %v540
    %v735 = vunpack.c.l.b16 %v541
    %v736 = vunpack.c.h.b16 %v541
    %v737 = vunpack.c.l.b16 %v542
    %v738 = vunpack.c.h.b16 %v542
    %v739 = vunpack.c.l.b16 %v543
    %v740 = vunpack.c.h.b16 %v543
    %v741 = vunpack.c.l.b16 %v544
    %v742 = vunpack.c.h.b16 %v544
    %v743 = vpack.c.b16 %v617, %v615
    %v744 = vpack.c.b16 %v618, %v616
    %v745 = vpack.c.b16 %v621, %v619
    %v746 = vpack.c.b16 %v622, %v620
    %v747 = vpack.c.b16 %v625, %v623
    %v748 = vpack.c.b16 %v626, %v624
    %v749 = vpack.c.b16 %v629, %v627
    %v750 = vpack.c.b16 %v630, %v628
    %v751 = vpack.c.b16 %v633, %v631
    %v752 = vpack.c.b16 %v634, %v632
    %v753 = vpack.c.b16 %v637, %v635
    %v754 = vpack.c.b16 %v638, %v636
    %v755 = vpack.c.b16 %v641, %v639
    %v756 = vpack.c.b16 %v642, %v640
    %v757 = vpack.c.b16 %v645, %v643
    %v758 = vpack.c.b16 %v646, %v644
    %v759 = vpack.c.b16 %v649, %v647
    %v760 = vpack.c.b16 %v650, %v648
    %v761 = vpack.c.b16 %v653, %v651
    %v762 = vpack.c.b16 %v654, %v652
    %v763 = vpack.c.b16 %v657, %v655
    %v764 = vpack.c.b16 %v658, %v656
    %v765 = vpack.c.b16 %v661, %v659
    %v766 = vpack.c.b16 %v662, %v660
    %v767 = vpack.c.b16 %v665, %v663
    %v768 = vpack.c.b16 %v666, %v664
    %v769 = vpack.c.b16 %v669, %v667
    %v770 = vpack.c.b16 %v670, %v668
    %v771 = vpack.c.b16 %v673, %v671
    %v772 = vpack.c.b16 %v674, %v672
    %v773 = vpack.c.b16 %v677, %v675
    %v774 = vpack.c.b16 %v678, %v676
    %v775 = vpack.c.b16 %v681, %v679
    %v776 = vpack.c.b16 %v682, %v680
    %v777 = vpack.c.b16 %v685, %v683
    %v778 = vpack.c.b16 %v686, %v684
    %v779 = vpack.c.b16 %v689, %v687
    %v780 = vpack.c.b16 %v690, %v688
    %v781 = vpack.c.b16 %v693, %v691
    %v782 = vpack.c.b16 %v694, %v692
    %v783 = vpack.c.b16 %v697, %v695
    %v784 = vpack.c.b16 %v698, %v696
    %v785 = vpack.c.b16 %v701, %v699
    %v786 = vpack.c.b16 %v702, %v700
    %v787 = vpack.c.b16 %v705, %v703
    %v788 = vpack.c.b16 %v706, %v704
    %v789 = vpack.c.b16 %v709, %v707
    %v790 = vpack.c.b16 %v710, %v708
    %v791 = vpack.c.b16 %v713, %v711
    %v792 = vpack.c.b16 %v714, %v712
    %v793 = vpack.c.b16 %v717, %v715
    %v794 = vpack.c.b16 %v718, %v716
    %v795 = vpack.c.b16 %v721, %v719
    %v796 = vpack.c.b16 %v722, %v720
    %v797 = vpack.c.b16 %v725, %v723
    %v798 = vpack.c.b16 %v726, %v724
    %v799 = vpack.c.b16 %v729, %v727
    %v800 = vpack.c.b16 %v730, %v728
    %v801 = vpack.c.b16 %v733, %v731
    %v802 = vpack.c.b16 %v734, %v732
    %v803 = vpack.c.b16 %v737, %v735
    %v804 = vpack.c.b16 %v738, %v736
    %v805 = vpack.c.b16 %v741, %v739
    %v806 = vpack.c.b16 %v742, %v740
    %871 = vmatpush.bf16.msra.mxu0 %v757
    %872 = vmatpush.bf16.msra.mxu0 %v755
    %873 = vmatpush.bf16.msra.mxu0 %v753
    %874 = vmatpush.bf16.msra.mxu0 %v751
    %875 = vmatpush.bf16.msra.mxu0 %v749
    %876 = vmatpush.bf16.msra.mxu0 %v747
    %877 = vmatpush.bf16.msra.mxu0 %v745
    %878 = vmatpush.bf16.msra.mxu0 %v743
    %879 = vmatmul.bf16.gmra.mxu0 %v477
    %v880 = vpop.f32.mrf.mxu0
    %v881 = vadd.f32 %v547, %v880
    %v882 = vpop.f32.mrf.mxu0
    %v883 = vadd.f32 %v547, %v882
    %884 = vdwg.mxu0
    %885 = vmatpush.bf16.msra.mxu0 %v773
    %886 = vmatpush.bf16.msra.mxu0 %v771
    %887 = vmatpush.bf16.msra.mxu0 %v769
    %888 = vmatpush.bf16.msra.mxu0 %v767
    %889 = vmatpush.bf16.msra.mxu0 %v765
    %890 = vmatpush.bf16.msra.mxu0 %v763
    %891 = vmatpush.bf16.msra.mxu0 %v761
    %892 = vmatpush.bf16.msra.mxu0 %v759
    %893 = vmatmul.bf16.gmra.mxu0 %v478
    %v894 = vpop.f32.mrf.mxu0
    %v895 = vadd.f32 %v881, %v894
    %v896 = vpop.f32.mrf.mxu0
    %v897 = vadd.f32 %v883, %v896
    %898 = vdwg.mxu0
    %899 = vmatpush.bf16.msra.mxu0 %v789
    %900 = vmatpush.bf16.msra.mxu0 %v787
    %901 = vmatpush.bf16.msra.mxu0 %v785
    %902 = vmatpush.bf16.msra.mxu0 %v783
    %903 = vmatpush.bf16.msra.mxu0 %v781
    %904 = vmatpush.bf16.msra.mxu0 %v779
    %905 = vmatpush.bf16.msra.mxu0 %v777
    %906 = vmatpush.bf16.msra.mxu0 %v775
    %907 = vmatmul.bf16.gmra.mxu0 %v479
    %v908 = vpop.f32.mrf.mxu0
    %v909 = vadd.f32 %v895, %v908
    %v910 = vpop.f32.mrf.mxu0
    %v911 = vadd.f32 %v897, %v910
    %912 = vdwg.mxu0
    %913 = vmatpush.bf16.msra.mxu0 %v805
    %914 = vmatpush.bf16.msra.mxu0 %v803
    %915 = vmatpush.bf16.msra.mxu0 %v801
    %916 = vmatpush.bf16.msra.mxu0 %v799
    %917 = vmatpush.bf16.msra.mxu0 %v797
    %918 = vmatpush.bf16.msra.mxu0 %v795
    %919 = vmatpush.bf16.msra.mxu0 %v793
    %920 = vmatpush.bf16.msra.mxu0 %v791
    %921 = vmatmul.bf16.gmra.mxu0 %v480
    %v922 = vpop.f32.mrf.mxu0
    %v923 = vadd.f32 %v909, %v922
    %v924 = vpop.f32.mrf.mxu0
    %v925 = vadd.f32 %v911, %v924
    %926 = vdwg.mxu0
    %927 = vmatpush.bf16.msra.mxu0 %v758
    %928 = vmatpush.bf16.msra.mxu0 %v756
    %929 = vmatpush.bf16.msra.mxu0 %v754
    %930 = vmatpush.bf16.msra.mxu0 %v752
    %931 = vmatpush.bf16.msra.mxu0 %v750
    %932 = vmatpush.bf16.msra.mxu0 %v748
    %933 = vmatpush.bf16.msra.mxu0 %v746
    %934 = vmatpush.bf16.msra.mxu0 %v744
    %935 = vmatmul.bf16.gmra.mxu0 %v477
    %v936 = vpop.f32.mrf.mxu0
    %v937 = vadd.f32 %v548, %v936
    %v938 = vpop.f32.mrf.mxu0
    %v939 = vadd.f32 %v548, %v938
    %940 = vdwg.mxu0
    %941 = vmatpush.bf16.msra.mxu0 %v774
    %942 = vmatpush.bf16.msra.mxu0 %v772
    %943 = vmatpush.bf16.msra.mxu0 %v770
    %944 = vmatpush.bf16.msra.mxu0 %v768
    %945 = vmatpush.bf16.msra.mxu0 %v766
    %946 = vmatpush.bf16.msra.mxu0 %v764
    %947 = vmatpush.bf16.msra.mxu0 %v762
    %948 = vmatpush.bf16.msra.mxu0 %v760
    %949 = vmatmul.bf16.gmra.mxu0 %v478
    %v950 = vpop.f32.mrf.mxu0
    %v951 = vadd.f32 %v937, %v950
    %v952 = vpop.f32.mrf.mxu0
    %v953 = vadd.f32 %v939, %v952
    %954 = vdwg.mxu0
    %955 = vmatpush.bf16.msra.mxu0 %v790
    %956 = vmatpush.bf16.msra.mxu0 %v788
    %957 = vmatpush.bf16.msra.mxu0 %v786
    %958 = vmatpush.bf16.msra.mxu0 %v784
    %959 = vmatpush.bf16.msra.mxu0 %v782
    %960 = vmatpush.bf16.msra.mxu0 %v780
    %961 = vmatpush.bf16.msra.mxu0 %v778
    %962 = vmatpush.bf16.msra.mxu0 %v776
    %963 = vmatmul.bf16.gmra.mxu0 %v479
    %v964 = vpop.f32.mrf.mxu0
    %v965 = vadd.f32 %v951, %v964
    %v966 = vpop.f32.mrf.mxu0
    %v967 = vadd.f32 %v953, %v966
    %968 = vdwg.mxu0
    %969 = vmatpush.bf16.msra.mxu0 %v806
    %970 = vmatpush.bf16.msra.mxu0 %v804
    %971 = vmatpush.bf16.msra.mxu0 %v802
    %972 = vmatpush.bf16.msra.mxu0 %v800
    %973 = vmatpush.bf16.msra.mxu0 %v798
    %974 = vmatpush.bf16.msra.mxu0 %v796
    %975 = vmatpush.bf16.msra.mxu0 %v794
    %976 = vmatpush.bf16.msra.mxu0 %v792
    %977 = vmatmul.bf16.gmra.mxu0 %v480
    %v978 = vpop.f32.mrf.mxu0
    %v979 = vadd.f32 %v965, %v978
    %v980 = vpop.f32.mrf.mxu0
    %v981 = vadd.f32 %v967, %v980
    %982 = vdwg.mxu0
    %v983 = vmax.f32 %v923, 0.0
    %v984 = vmax.f32 %v979, 0.0
    %v985 = vmax.f32 %v925, 0.0
    %v986 = vmax.f32 %v981, 0.0
    %v987 = vpack.c.bf16 %v985, %v983
    %v988 = vpack.c.bf16 %v986, %v984
    %v989 = vld [vmem:[#allocation11] sm:$0xff]
    %v990 = vld [vmem:[#allocation11 + $0x8] sm:$0xff]
    %v991 = vld [vmem:[#allocation11 + $0x10] sm:$0xff]
    %v992 = vld [vmem:[#allocation11 + $0x18] sm:$0xff]
    %v993 = vld [vmem:[#allocation11 + $0x20] sm:$0xff]
    %v994 = vld [vmem:[#allocation11 + $0x28] sm:$0xff]
    %v995 = vld [vmem:[#allocation11 + $0x30] sm:$0xff]
    %v996 = vld [vmem:[#allocation11 + $0x38] sm:$0xff]
    %v997 = vld [vmem:[#allocation11 + $0x40] sm:$0xff]
    %v998 = vld [vmem:[#allocation11 + $0x48] sm:$0xff]
    %v999 = vld [vmem:[#allocation11 + $0x50] sm:$0xff]
    %v1000 = vld [vmem:[#allocation11 + $0x58] sm:$0xff]
    %v1001 = vld [vmem:[#allocation11 + $0x60] sm:$0xff]
    %v1002 = vld [vmem:[#allocation11 + $0x68] sm:$0xff]
    %v1003 = vld [vmem:[#allocation11 + $0x70] sm:$0xff]
    %v1004 = vld [vmem:[#allocation11 + $0x78] sm:$0xff]
    %v1005 = vld [vmem:[#allocation11 + $0x80] sm:$0xff]
    %v1006 = vld [vmem:[#allocation11 + $0x88] sm:$0xff]
    %v1007 = vld [vmem:[#allocation11 + $0x90] sm:$0xff]
    %v1008 = vld [vmem:[#allocation11 + $0x98] sm:$0xff]
    %v1009 = vld [vmem:[#allocation11 + $0xa0] sm:$0xff]
    %v1010 = vld [vmem:[#allocation11 + $0xa8] sm:$0xff]
    %v1011 = vld [vmem:[#allocation11 + $0xb0] sm:$0xff]
    %v1012 = vld [vmem:[#allocation11 + $0xb8] sm:$0xff]
    %v1013 = vld [vmem:[#allocation11 + $0xc0] sm:$0xff]
    %v1014 = vld [vmem:[#allocation11 + $0xc8] sm:$0xff]
    %v1015 = vld [vmem:[#allocation11 + $0xd0] sm:$0xff]
    %v1016 = vld [vmem:[#allocation11 + $0xd8] sm:$0xff]
    %v1017 = vld [vmem:[#allocation11 + $0xe0] sm:$0xff]
    %v1018 = vld [vmem:[#allocation11 + $0xe8] sm:$0xff]
    %v1019 = vld [vmem:[#allocation11 + $0xf0] sm:$0xff]
    %v1020 = vld [vmem:[#allocation11 + $0xf8] sm:$0xff]
    %v1021 = vld [vmem:[#allocation13] sm:$0x3]
    %v1023 = vperm.slane %v1021, 0
    %v1024 = vperm.slane %v1021, 1
    %v1059 = vunpack.c.l.b16 %v989
    %v1060 = vunpack.c.h.b16 %v989
    %v1061 = vunpack.c.l.b16 %v990
    %v1062 = vunpack.c.h.b16 %v990
    %v1063 = vunpack.c.l.b16 %v991
    %v1064 = vunpack.c.h.b16 %v991
    %v1065 = vunpack.c.l.b16 %v992
    %v1066 = vunpack.c.h.b16 %v992
    %v1067 = vunpack.c.l.b16 %v993
    %v1068 = vunpack.c.h.b16 %v993
    %v1069 = vunpack.c.l.b16 %v994
    %v1070 = vunpack.c.h.b16 %v994
    %v1071 = vunpack.c.l.b16 %v995
    %v1072 = vunpack.c.h.b16 %v995
    %v1073 = vunpack.c.l.b16 %v996
    %v1074 = vunpack.c.h.b16 %v996
    %v1075 = vunpack.c.l.b16 %v997
    %v1076 = vunpack.c.h.b16 %v997
    %v1077 = vunpack.c.l.b16 %v998
    %v1078 = vunpack.c.h.b16 %v998
    %v1079 = vunpack.c.l.b16 %v999
    %v1080 = vunpack.c.h.b16 %v999
    %v1081 = vunpack.c.l.b16 %v1000
    %v1082 = vunpack.c.h.b16 %v1000
    %v1083 = vunpack.c.l.b16 %v1001
    %v1084 = vunpack.c.h.b16 %v1001
    %v1085 = vunpack.c.l.b16 %v1002
    %v1086 = vunpack.c.h.b16 %v1002
    %v1087 = vunpack.c.l.b16 %v1003
    %v1088 = vunpack.c.h.b16 %v1003
    %v1089 = vunpack.c.l.b16 %v1004
    %v1090 = vunpack.c.h.b16 %v1004
    %v1091 = vunpack.c.l.b16 %v1005
    %v1092 = vunpack.c.h.b16 %v1005
    %v1093 = vunpack.c.l.b16 %v1006
    %v1094 = vunpack.c.h.b16 %v1006
    %v1095 = vunpack.c.l.b16 %v1007
    %v1096 = vunpack.c.h.b16 %v1007
    %v1097 = vunpack.c.l.b16 %v1008
    %v1098 = vunpack.c.h.b16 %v1008
    %v1099 = vunpack.c.l.b16 %v1009
    %v1100 = vunpack.c.h.b16 %v1009
    %v1101 = vunpack.c.l.b16 %v1010
    %v1102 = vunpack.c.h.b16 %v1010
    %v1103 = vunpack.c.l.b16 %v1011
    %v1104 = vunpack.c.h.b16 %v1011
    %v1105 = vunpack.c.l.b16 %v1012
    %v1106 = vunpack.c.h.b16 %v1012
    %v1107 = vunpack.c.l.b16 %v1013
    %v1108 = vunpack.c.h.b16 %v1013
    %v1109 = vunpack.c.l.b16 %v1014
    %v1110 = vunpack.c.h.b16 %v1014
    %v1111 = vunpack.c.l.b16 %v1015
    %v1112 = vunpack.c.h.b16 %v1015
    %v1113 = vunpack.c.l.b16 %v1016
    %v1114 = vunpack.c.h.b16 %v1016
    %v1115 = vunpack.c.l.b16 %v1017
    %v1116 = vunpack.c.h.b16 %v1017
    %v1117 = vunpack.c.l.b16 %v1018
    %v1118 = vunpack.c.h.b16 %v1018
    %v1119 = vunpack.c.l.b16 %v1019
    %v1120 = vunpack.c.h.b16 %v1019
    %v1121 = vunpack.c.l.b16 %v1020
    %v1122 = vunpack.c.h.b16 %v1020
    %v1123 = vpack.c.b16 %v1061, %v1059
    %v1124 = vpack.c.b16 %v1062, %v1060
    %v1125 = vpack.c.b16 %v1065, %v1063
    %v1126 = vpack.c.b16 %v1066, %v1064
    %v1127 = vpack.c.b16 %v1069, %v1067
    %v1128 = vpack.c.b16 %v1070, %v1068
    %v1129 = vpack.c.b16 %v1073, %v1071
    %v1130 = vpack.c.b16 %v1074, %v1072
    %v1131 = vpack.c.b16 %v1077, %v1075
    %v1132 = vpack.c.b16 %v1078, %v1076
    %v1133 = vpack.c.b16 %v1081, %v1079
    %v1134 = vpack.c.b16 %v1082, %v1080
    %v1135 = vpack.c.b16 %v1085, %v1083
    %v1136 = vpack.c.b16 %v1086, %v1084
    %v1137 = vpack.c.b16 %v1089, %v1087
    %v1138 = vpack.c.b16 %v1090, %v1088
    %v1139 = vpack.c.b16 %v1093, %v1091
    %v1140 = vpack.c.b16 %v1094, %v1092
    %v1141 = vpack.c.b16 %v1097, %v1095
    %v1142 = vpack.c.b16 %v1098, %v1096
    %v1143 = vpack.c.b16 %v1101, %v1099
    %v1144 = vpack.c.b16 %v1102, %v1100
    %v1145 = vpack.c.b16 %v1105, %v1103
    %v1146 = vpack.c.b16 %v1106, %v1104
    %v1147 = vpack.c.b16 %v1109, %v1107
    %v1148 = vpack.c.b16 %v1110, %v1108
    %v1149 = vpack.c.b16 %v1113, %v1111
    %v1150 = vpack.c.b16 %v1114, %v1112
    %v1151 = vpack.c.b16 %v1117, %v1115
    %v1152 = vpack.c.b16 %v1118, %v1116
    %v1153 = vpack.c.b16 %v1121, %v1119
    %v1154 = vpack.c.b16 %v1122, %v1120
    %1187 = vmatpush.bf16.msra.mxu0 %v1137
    %1188 = vmatpush.bf16.msra.mxu0 %v1135
    %1189 = vmatpush.bf16.msra.mxu0 %v1133
    %1190 = vmatpush.bf16.msra.mxu0 %v1131
    %1191 = vmatpush.bf16.msra.mxu0 %v1129
    %1192 = vmatpush.bf16.msra.mxu0 %v1127
    %1193 = vmatpush.bf16.msra.mxu0 %v1125
    %1194 = vmatpush.bf16.msra.mxu0 %v1123
    %1195 = vmatmul.bf16.gmra.mxu0 %v987
    %v1196 = vpop.f32.mrf.mxu0
    %v1197 = vadd.f32 %v1023, %v1196
    %v1198 = vpop.f32.mrf.mxu0
    %v1199 = vadd.f32 %v1023, %v1198
    %1200 = vdwg.mxu0
    %1201 = vmatpush.bf16.msra.mxu0 %v1153
    %1202 = vmatpush.bf16.msra.mxu0 %v1151
    %1203 = vmatpush.bf16.msra.mxu0 %v1149
    %1204 = vmatpush.bf16.msra.mxu0 %v1147
    %1205 = vmatpush.bf16.msra.mxu0 %v1145
    %1206 = vmatpush.bf16.msra.mxu0 %v1143
    %1207 = vmatpush.bf16.msra.mxu0 %v1141
    %1208 = vmatpush.bf16.msra.mxu0 %v1139
    %1209 = vmatmul.bf16.gmra.mxu0 %v988
    %v1210 = vpop.f32.mrf.mxu0
    %v1211 = vadd.f32 %v1197, %v1210
    %v1212 = vpop.f32.mrf.mxu0
    %v1213 = vadd.f32 %v1199, %v1212
    %1214 = vdwg.mxu0
    %1215 = vmatpush.bf16.msra.mxu0 %v1138
    %1216 = vmatpush.bf16.msra.mxu0 %v1136
    %1217 = vmatpush.bf16.msra.mxu0 %v1134
    %1218 = vmatpush.bf16.msra.mxu0 %v1132
    %1219 = vmatpush.bf16.msra.mxu0 %v1130
    %1220 = vmatpush.bf16.msra.mxu0 %v1128
    %1221 = vmatpush.bf16.msra.mxu0 %v1126
    %1222 = vmatpush.bf16.msra.mxu0 %v1124
    %1223 = vmatmul.bf16.gmra.mxu0 %v987
    %v1224 = vpop.f32.mrf.mxu0
    %v1225 = vadd.f32 %v1024, %v1224
    %v1226 = vpop.f32.mrf.mxu0
    %v1227 = vadd.f32 %v1024, %v1226
    %1228 = vdwg.mxu0
    %1229 = vmatpush.bf16.msra.mxu0 %v1154
    %1230 = vmatpush.bf16.msra.mxu0 %v1152
    %1231 = vmatpush.bf16.msra.mxu0 %v1150
    %1232 = vmatpush.bf16.msra.mxu0 %v1148
    %1233 = vmatpush.bf16.msra.mxu0 %v1146
    %1234 = vmatpush.bf16.msra.mxu0 %v1144
    %1235 = vmatpush.bf16.msra.mxu0 %v1142
    %1236 = vmatpush.bf16.msra.mxu0 %v1140
    %1237 = vmatmul.bf16.gmra.mxu0 %v988
    %v1238 = vpop.f32.mrf.mxu0
    %v1239 = vadd.f32 %v1225, %v1238
    %v1240 = vpop.f32.mrf.mxu0
    %v1241 = vadd.f32 %v1227, %v1240
    %1242 = vdwg.mxu0
    %v1243 = vld [vmem:[#allocation5] sm:$0xff]
    %v1244 = vld [vmem:[#allocation5 + $0x8] sm:$0xff]
    %v1245 = vmul.f32 %v1239, 0.5
    %v1246 = vmul.f32 %v1241, 0.5
    %v1247 = vmul.f32 %v1245, 1.442695
    %v1248 = vpow.pop %v1247
    %v1249 = vmul.f32 %v1246, 1.442695
    %v1250 = vpow.pop %v1249
    %v1251 = vmul.f32 %v1243, %v1248
    %v1252 = vmul.f32 %v1244, %v1250
    %v1253 = vadd.f32 %v1211, %v1251
    %v1254 = vadd.f32 %v1213, %v1252
    %v1255 = vpack.c.bf16 %v1254, %v1253
    %v1256 = vld [vmem:[#allocation14] sm:$0xff]
    %v1257 = vld [vmem:[#allocation14 + $0x8] sm:$0xff]
    %v1258 = vld [vmem:[#allocation14 + $0x10] sm:$0xff]
    %v1259 = vld [vmem:[#allocation14 + $0x18] sm:$0xff]
    %v1260 = vld [vmem:[#allocation14 + $0x20] sm:$0xff]
    %v1261 = vld [vmem:[#allocation14 + $0x28] sm:$0xff]
    %v1262 = vld [vmem:[#allocation14 + $0x30] sm:$0xff]
    %v1263 = vld [vmem:[#allocation14 + $0x38] sm:$0xff]
    %v1264 = vld [vmem:[#allocation14 + $0x40] sm:$0xff]
    %v1265 = vld [vmem:[#allocation14 + $0x48] sm:$0xff]
    %v1266 = vld [vmem:[#allocation14 + $0x50] sm:$0xff]
    %v1267 = vld [vmem:[#allocation14 + $0x58] sm:$0xff]
    %v1268 = vld [vmem:[#allocation14 + $0x60] sm:$0xff]
    %v1269 = vld [vmem:[#allocation14 + $0x68] sm:$0xff]
    %v1270 = vld [vmem:[#allocation14 + $0x70] sm:$0xff]
    %v1271 = vld [vmem:[#allocation14 + $0x78] sm:$0xff]
    %v1272 = vld [vmem:[%s9] sm:$0x3]
    %v1274 = vperm.slane %v1272, 0
    %v1275 = vperm.slane %v1272, 1
    %v1294 = vunpack.c.l.b16 %v1256
    %v1295 = vunpack.c.h.b16 %v1256
    %v1296 = vunpack.c.l.b16 %v1257
    %v1297 = vunpack.c.h.b16 %v1257
    %v1298 = vunpack.c.l.b16 %v1258
    %v1299 = vunpack.c.h.b16 %v1258
    %v1300 = vunpack.c.l.b16 %v1259
    %v1301 = vunpack.c.h.b16 %v1259
    %v1302 = vunpack.c.l.b16 %v1260
    %v1303 = vunpack.c.h.b16 %v1260
    %v1304 = vunpack.c.l.b16 %v1261
    %v1305 = vunpack.c.h.b16 %v1261
    %v1306 = vunpack.c.l.b16 %v1262
    %v1307 = vunpack.c.h.b16 %v1262
    %v1308 = vunpack.c.l.b16 %v1263
    %v1309 = vunpack.c.h.b16 %v1263
    %v1310 = vunpack.c.l.b16 %v1264
    %v1311 = vunpack.c.h.b16 %v1264
    %v1312 = vunpack.c.l.b16 %v1265
    %v1313 = vunpack.c.h.b16 %v1265
    %v1314 = vunpack.c.l.b16 %v1266
    %v1315 = vunpack.c.h.b16 %v1266
    %v1316 = vunpack.c.l.b16 %v1267
    %v1317 = vunpack.c.h.b16 %v1267
    %v1318 = vunpack.c.l.b16 %v1268
    %v1319 = vunpack.c.h.b16 %v1268
    %v1320 = vunpack.c.l.b16 %v1269
    %v1321 = vunpack.c.h.b16 %v1269
    %v1322 = vunpack.c.l.b16 %v1270
    %v1323 = vunpack.c.h.b16 %v1270
    %v1324 = vunpack.c.l.b16 %v1271
    %v1325 = vunpack.c.h.b16 %v1271
    %v1326 = vpack.c.b16 %v1296, %v1294
    %v1327 = vpack.c.b16 %v1297, %v1295
    %v1328 = vpack.c.b16 %v1300, %v1298
    %v1329 = vpack.c.b16 %v1301, %v1299
    %v1330 = vpack.c.b16 %v1304, %v1302
    %v1331 = vpack.c.b16 %v1305, %v1303
    %v1332 = vpack.c.b16 %v1308, %v1306
    %v1333 = vpack.c.b16 %v1309, %v1307
    %v1334 = vpack.c.b16 %v1312, %v1310
    %v1335 = vpack.c.b16 %v1313, %v1311
    %v1336 = vpack.c.b16 %v1316, %v1314
    %v1337 = vpack.c.b16 %v1317, %v1315
    %v1338 = vpack.c.b16 %v1320, %v1318
    %v1339 = vpack.c.b16 %v1321, %v1319
    %v1340 = vpack.c.b16 %v1324, %v1322
    %v1341 = vpack.c.b16 %v1325, %v1323
    %1358 = vmatpush.bf16.msra.mxu0 %v1340
    %1359 = vmatpush.bf16.msra.mxu0 %v1338
    %1360 = vmatpush.bf16.msra.mxu0 %v1336
    %1361 = vmatpush.bf16.msra.mxu0 %v1334
    %1362 = vmatpush.bf16.msra.mxu0 %v1332
    %1363 = vmatpush.bf16.msra.mxu0 %v1330
    %1364 = vmatpush.bf16.msra.mxu0 %v1328
    %1365 = vmatpush.bf16.msra.mxu0 %v1326
    %1366 = vmatmul.bf16.gmra.mxu0 %v1255
    %v1367 = vpop.f32.mrf.mxu0
    %v1368 = vadd.f32 %v1274, %v1367
    %v1369 = vpop.f32.mrf.mxu0
    %v1370 = vadd.f32 %v1274, %v1369
    %1371 = vdwg.mxu0
    %1372 = vmatpush.bf16.msra.mxu0 %v1341
    %1373 = vmatpush.bf16.msra.mxu0 %v1339
    %1374 = vmatpush.bf16.msra.mxu0 %v1337
    %1375 = vmatpush.bf16.msra.mxu0 %v1335
    %1376 = vmatpush.bf16.msra.mxu0 %v1333
    %1377 = vmatpush.bf16.msra.mxu0 %v1331
    %1378 = vmatpush.bf16.msra.mxu0 %v1329
    %1379 = vmatpush.bf16.msra.mxu0 %v1327
    %1380 = vmatmul.bf16.gmra.mxu0 %v1255
    %v1381 = vpop.f32.mrf.mxu0
    %v1382 = vadd.f32 %v1275, %v1381
    %v1383 = vpop.f32.mrf.mxu0
    %v1384 = vadd.f32 %v1275, %v1383
    %1385 = vdwg.mxu0
    %v1386 = vmax.f32 %v1368, 0.0
    %v1387 = vmax.f32 %v1382, 0.0
    %v1388 = vmax.f32 %v1370, 0.0
    %v1389 = vmax.f32 %v1384, 0.0
    %v1390 = vpack.c.bf16 %v1388, %v1386
    %v1391 = vpack.c.bf16 %v1389, %v1387
    %v1392 = vld [vmem:[#allocation16] sm:$0xff]
    %v1393 = vld [vmem:[#allocation16 + $0x8] sm:$0xff]
    %v1394 = vld [vmem:[#allocation16 + $0x10] sm:$0xff]
    %v1395 = vld [vmem:[#allocation16 + $0x18] sm:$0xff]
    %v1396 = vld [vmem:[#allocation16 + $0x20] sm:$0xff]
    %v1397 = vld [vmem:[#allocation16 + $0x28] sm:$0xff]
    %v1398 = vld [vmem:[#allocation16 + $0x30] sm:$0xff]
    %v1399 = vld [vmem:[#allocation16 + $0x38] sm:$0xff]
    %v1400 = vld [vmem:[#allocation16 + $0x40] sm:$0xff]
    %v1401 = vld [vmem:[#allocation16 + $0x48] sm:$0xff]
    %v1402 = vld [vmem:[#allocation16 + $0x50] sm:$0xff]
    %v1403 = vld [vmem:[#allocation16 + $0x58] sm:$0xff]
    %v1404 = vld [vmem:[#allocation16 + $0x60] sm:$0xff]
    %v1405 = vld [vmem:[#allocation16 + $0x68] sm:$0xff]
    %v1406 = vld [vmem:[#allocation16 + $0x70] sm:$0xff]
    %v1407 = vld [vmem:[#allocation16 + $0x78] sm:$0xff]
    %v1408 = vld [vmem:[#allocation16 + $0x80] sm:$0xff]
    %v1409 = vld [vmem:[#allocation16 + $0x88] sm:$0xff]
    %v1410 = vld [vmem:[#allocation16 + $0x90] sm:$0xff]
    %v1411 = vld [vmem:[#allocation16 + $0x98] sm:$0xff]
    %v1412 = vld [vmem:[#allocation16 + $0xa0] sm:$0xff]
    %v1413 = vld [vmem:[#allocation16 + $0xa8] sm:$0xff]
    %v1414 = vld [vmem:[#allocation16 + $0xb0] sm:$0xff]
    %v1415 = vld [vmem:[#allocation16 + $0xb8] sm:$0xff]
    %v1416 = vld [vmem:[#allocation16 + $0xc0] sm:$0xff]
    %v1417 = vld [vmem:[#allocation16 + $0xc8] sm:$0xff]
    %v1418 = vld [vmem:[#allocation16 + $0xd0] sm:$0xff]
    %v1419 = vld [vmem:[#allocation16 + $0xd8] sm:$0xff]
    %v1420 = vld [vmem:[#allocation16 + $0xe0] sm:$0xff]
    %v1421 = vld [vmem:[#allocation16 + $0xe8] sm:$0xff]
    %v1422 = vld [vmem:[#allocation16 + $0xf0] sm:$0xff]
    %v1423 = vld [vmem:[#allocation16 + $0xf8] sm:$0xff]
    %v1424 = vld [vmem:[#allocation16 + $0x100] sm:$0xff]
    %v1425 = vld [vmem:[#allocation16 + $0x108] sm:$0xff]
    %v1426 = vld [vmem:[#allocation16 + $0x110] sm:$0xff]
    %v1427 = vld [vmem:[#allocation16 + $0x118] sm:$0xff]
    %v1428 = vld [vmem:[#allocation16 + $0x120] sm:$0xff]
    %v1429 = vld [vmem:[#allocation16 + $0x128] sm:$0xff]
    %v1430 = vld [vmem:[#allocation16 + $0x130] sm:$0xff]
    %v1431 = vld [vmem:[#allocation16 + $0x138] sm:$0xff]
    %v1432 = vld [vmem:[#allocation16 + $0x140] sm:$0xff]
    %v1433 = vld [vmem:[#allocation16 + $0x148] sm:$0xff]
    %v1434 = vld [vmem:[#allocation16 + $0x150] sm:$0xff]
    %v1435 = vld [vmem:[#allocation16 + $0x158] sm:$0xff]
    %v1436 = vld [vmem:[#allocation16 + $0x160] sm:$0xff]
    %v1437 = vld [vmem:[#allocation16 + $0x168] sm:$0xff]
    %v1438 = vld [vmem:[#allocation16 + $0x170] sm:$0xff]
    %v1439 = vld [vmem:[#allocation16 + $0x178] sm:$0xff]
    %v1440 = vld [vmem:[#allocation16 + $0x180] sm:$0xff]
    %v1441 = vld [vmem:[#allocation16 + $0x188] sm:$0xff]
    %v1442 = vld [vmem:[#allocation16 + $0x190] sm:$0xff]
    %v1443 = vld [vmem:[#allocation16 + $0x198] sm:$0xff]
    %v1444 = vld [vmem:[#allocation16 + $0x1a0] sm:$0xff]
    %v1445 = vld [vmem:[#allocation16 + $0x1a8] sm:$0xff]
    %v1446 = vld [vmem:[#allocation16 + $0x1b0] sm:$0xff]
    %v1447 = vld [vmem:[#allocation16 + $0x1b8] sm:$0xff]
    %v1448 = vld [vmem:[#allocation16 + $0x1c0] sm:$0xff]
    %v1449 = vld [vmem:[#allocation16 + $0x1c8] sm:$0xff]
    %v1450 = vld [vmem:[#allocation16 + $0x1d0] sm:$0xff]
    %v1451 = vld [vmem:[#allocation16 + $0x1d8] sm:$0xff]
    %v1452 = vld [vmem:[#allocation16 + $0x1e0] sm:$0xff]
    %v1453 = vld [vmem:[#allocation16 + $0x1e8] sm:$0xff]
    %v1454 = vld [vmem:[#allocation16 + $0x1f0] sm:$0xff]
    %v1455 = vld [vmem:[#allocation16 + $0x1f8] sm:$0xff]
    %v1456 = vld [vmem:[%s11] sm:$0xf]
    %v1458 = vperm.slane %v1456, 0
    %v1459 = vperm.slane %v1456, 1
    %v1460 = vperm.slane %v1456, 2
    %v1461 = vperm.slane %v1456, 3
    %v1530 = vunpack.c.l.b16 %v1392
    %v1531 = vunpack.c.h.b16 %v1392
    %v1532 = vunpack.c.l.b16 %v1393
    %v1533 = vunpack.c.h.b16 %v1393
    %v1534 = vunpack.c.l.b16 %v1394
    %v1535 = vunpack.c.h.b16 %v1394
    %v1536 = vunpack.c.l.b16 %v1395
    %v1537 = vunpack.c.h.b16 %v1395
    %v1538 = vunpack.c.l.b16 %v1396
    %v1539 = vunpack.c.h.b16 %v1396
    %v1540 = vunpack.c.l.b16 %v1397
    %v1541 = vunpack.c.h.b16 %v1397
    %v1542 = vunpack.c.l.b16 %v1398
    %v1543 = vunpack.c.h.b16 %v1398
    %v1544 = vunpack.c.l.b16 %v1399
    %v1545 = vunpack.c.h.b16 %v1399
    %v1546 = vunpack.c.l.b16 %v1400
    %v1547 = vunpack.c.h.b16 %v1400
    %v1548 = vunpack.c.l.b16 %v1401
    %v1549 = vunpack.c.h.b16 %v1401
    %v1550 = vunpack.c.l.b16 %v1402
    %v1551 = vunpack.c.h.b16 %v1402
    %v1552 = vunpack.c.l.b16 %v1403
    %v1553 = vunpack.c.h.b16 %v1403
    %v1554 = vunpack.c.l.b16 %v1404
    %v1555 = vunpack.c.h.b16 %v1404
    %v1556 = vunpack.c.l.b16 %v1405
    %v1557 = vunpack.c.h.b16 %v1405
    %v1558 = vunpack.c.l.b16 %v1406
    %v1559 = vunpack.c.h.b16 %v1406
    %v1560 = vunpack.c.l.b16 %v1407
    %v1561 = vunpack.c.h.b16 %v1407
    %v1562 = vunpack.c.l.b16 %v1408
    %v1563 = vunpack.c.h.b16 %v1408
    %v1564 = vunpack.c.l.b16 %v1409
    %v1565 = vunpack.c.h.b16 %v1409
    %v1566 = vunpack.c.l.b16 %v1410
    %v1567 = vunpack.c.h.b16 %v1410
    %v1568 = vunpack.c.l.b16 %v1411
    %v1569 = vunpack.c.h.b16 %v1411
    %v1570 = vunpack.c.l.b16 %v1412
    %v1571 = vunpack.c.h.b16 %v1412
    %v1572 = vunpack.c.l.b16 %v1413
    %v1573 = vunpack.c.h.b16 %v1413
    %v1574 = vunpack.c.l.b16 %v1414
    %v1575 = vunpack.c.h.b16 %v1414
    %v1576 = vunpack.c.l.b16 %v1415
    %v1577 = vunpack.c.h.b16 %v1415
    %v1578 = vunpack.c.l.b16 %v1416
    %v1579 = vunpack.c.h.b16 %v1416
    %v1580 = vunpack.c.l.b16 %v1417
    %v1581 = vunpack.c.h.b16 %v1417
    %v1582 = vunpack.c.l.b16 %v1418
    %v1583 = vunpack.c.h.b16 %v1418
    %v1584 = vunpack.c.l.b16 %v1419
    %v1585 = vunpack.c.h.b16 %v1419
    %v1586 = vunpack.c.l.b16 %v1420
    %v1587 = vunpack.c.h.b16 %v1420
    %v1588 = vunpack.c.l.b16 %v1421
    %v1589 = vunpack.c.h.b16 %v1421
    %v1590 = vunpack.c.l.b16 %v1422
    %v1591 = vunpack.c.h.b16 %v1422
    %v1592 = vunpack.c.l.b16 %v1423
    %v1593 = vunpack.c.h.b16 %v1423
    %v1594 = vunpack.c.l.b16 %v1424
    %v1595 = vunpack.c.h.b16 %v1424
    %v1596 = vunpack.c.l.b16 %v1425
    %v1597 = vunpack.c.h.b16 %v1425
    %v1598 = vunpack.c.l.b16 %v1426
    %v1599 = vunpack.c.h.b16 %v1426
    %v1600 = vunpack.c.l.b16 %v1427
    %v1601 = vunpack.c.h.b16 %v1427
    %v1602 = vunpack.c.l.b16 %v1428
    %v1603 = vunpack.c.h.b16 %v1428
    %v1604 = vunpack.c.l.b16 %v1429
    %v1605 = vunpack.c.h.b16 %v1429
    %v1606 = vunpack.c.l.b16 %v1430
    %v1607 = vunpack.c.h.b16 %v1430
    %v1608 = vunpack.c.l.b16 %v1431
    %v1609 = vunpack.c.h.b16 %v1431
    %v1610 = vunpack.c.l.b16 %v1432
    %v1611 = vunpack.c.h.b16 %v1432
    %v1612 = vunpack.c.l.b16 %v1433
    %v1613 = vunpack.c.h.b16 %v1433
    %v1614 = vunpack.c.l.b16 %v1434
    %v1615 = vunpack.c.h.b16 %v1434
    %v1616 = vunpack.c.l.b16 %v1435
    %v1617 = vunpack.c.h.b16 %v1435
    %v1618 = vunpack.c.l.b16 %v1436
    %v1619 = vunpack.c.h.b16 %v1436
    %v1620 = vunpack.c.l.b16 %v1437
    %v1621 = vunpack.c.h.b16 %v1437
    %v1622 = vunpack.c.l.b16 %v1438
    %v1623 = vunpack.c.h.b16 %v1438
    %v1624 = vunpack.c.l.b16 %v1439
    %v1625 = vunpack.c.h.b16 %v1439
    %v1626 = vunpack.c.l.b16 %v1440
    %v1627 = vunpack.c.h.b16 %v1440
    %v1628 = vunpack.c.l.b16 %v1441
    %v1629 = vunpack.c.h.b16 %v1441
    %v1630 = vunpack.c.l.b16 %v1442
    %v1631 = vunpack.c.h.b16 %v1442
    %v1632 = vunpack.c.l.b16 %v1443
    %v1633 = vunpack.c.h.b16 %v1443
    %v1634 = vunpack.c.l.b16 %v1444
    %v1635 = vunpack.c.h.b16 %v1444
    %v1636 = vunpack.c.l.b16 %v1445
    %v1637 = vunpack.c.h.b16 %v1445
    %v1638 = vunpack.c.l.b16 %v1446
    %v1639 = vunpack.c.h.b16 %v1446
    %v1640 = vunpack.c.l.b16 %v1447
    %v1641 = vunpack.c.h.b16 %v1447
    %v1642 = vunpack.c.l.b16 %v1448
    %v1643 = vunpack.c.h.b16 %v1448
    %v1644 = vunpack.c.l.b16 %v1449
    %v1645 = vunpack.c.h.b16 %v1449
    %v1646 = vunpack.c.l.b16 %v1450
    %v1647 = vunpack.c.h.b16 %v1450
    %v1648 = vunpack.c.l.b16 %v1451
    %v1649 = vunpack.c.h.b16 %v1451
    %v1650 = vunpack.c.l.b16 %v1452
    %v1651 = vunpack.c.h.b16 %v1452
    %v1652 = vunpack.c.l.b16 %v1453
    %v1653 = vunpack.c.h.b16 %v1453
    %v1654 = vunpack.c.l.b16 %v1454
    %v1655 = vunpack.c.h.b16 %v1454
    %v1656 = vunpack.c.l.b16 %v1455
    %v1657 = vunpack.c.h.b16 %v1455
    %v1658 = vpack.c.b16 %v1534, %v1530
    %v1659 = vpack.c.b16 %v1535, %v1531
    %v1660 = vpack.c.b16 %v1536, %v1532
    %v1661 = vpack.c.b16 %v1537, %v1533
    %v1662 = vpack.c.b16 %v1542, %v1538
    %v1663 = vpack.c.b16 %v1543, %v1539
    %v1664 = vpack.c.b16 %v1544, %v1540
    %v1665 = vpack.c.b16 %v1545, %v1541
    %v1666 = vpack.c.b16 %v1550, %v1546
    %v1667 = vpack.c.b16 %v1551, %v1547
    %v1668 = vpack.c.b16 %v1552, %v1548
    %v1669 = vpack.c.b16 %v1553, %v1549
    %v1670 = vpack.c.b16 %v1558, %v1554
    %v1671 = vpack.c.b16 %v1559, %v1555
    %v1672 = vpack.c.b16 %v1560, %v1556
    %v1673 = vpack.c.b16 %v1561, %v1557
    %v1674 = vpack.c.b16 %v1566, %v1562
    %v1675 = vpack.c.b16 %v1567, %v1563
    %v1676 = vpack.c.b16 %v1568, %v1564
    %v1677 = vpack.c.b16 %v1569, %v1565
    %v1678 = vpack.c.b16 %v1574, %v1570
    %v1679 = vpack.c.b16 %v1575, %v1571
    %v1680 = vpack.c.b16 %v1576, %v1572
    %v1681 = vpack.c.b16 %v1577, %v1573
    %v1682 = vpack.c.b16 %v1582, %v1578
    %v1683 = vpack.c.b16 %v1583, %v1579
    %v1684 = vpack.c.b16 %v1584, %v1580
    %v1685 = vpack.c.b16 %v1585, %v1581
    %v1686 = vpack.c.b16 %v1590, %v1586
    %v1687 = vpack.c.b16 %v1591, %v1587
    %v1688 = vpack.c.b16 %v1592, %v1588
    %v1689 = vpack.c.b16 %v1593, %v1589
    %v1690 = vpack.c.b16 %v1598, %v1594
    %v1691 = vpack.c.b16 %v1599, %v1595
    %v1692 = vpack.c.b16 %v1600, %v1596
    %v1693 = vpack.c.b16 %v1601, %v1597
    %v1694 = vpack.c.b16 %v1606, %v1602
    %v1695 = vpack.c.b16 %v1607, %v1603
    %v1696 = vpack.c.b16 %v1608, %v1604
    %v1697 = vpack.c.b16 %v1609, %v1605
    %v1698 = vpack.c.b16 %v1614, %v1610
    %v1699 = vpack.c.b16 %v1615, %v1611
    %v1700 = vpack.c.b16 %v1616, %v1612
    %v1701 = vpack.c.b16 %v1617, %v1613
    %v1702 = vpack.c.b16 %v1622, %v1618
    %v1703 = vpack.c.b16 %v1623, %v1619
    %v1704 = vpack.c.b16 %v1624, %v1620
    %v1705 = vpack.c.b16 %v1625, %v1621
    %v1706 = vpack.c.b16 %v1630, %v1626
    %v1707 = vpack.c.b16 %v1631, %v1627
    %v1708 = vpack.c.b16 %v1632, %v1628
    %v1709 = vpack.c.b16 %v1633, %v1629
    %v1710 = vpack.c.b16 %v1638, %v1634
    %v1711 = vpack.c.b16 %v1639, %v1635
    %v1712 = vpack.c.b16 %v1640, %v1636
    %v1713 = vpack.c.b16 %v1641, %v1637
    %v1714 = vpack.c.b16 %v1646, %v1642
    %v1715 = vpack.c.b16 %v1647, %v1643
    %v1716 = vpack.c.b16 %v1648, %v1644
    %v1717 = vpack.c.b16 %v1649, %v1645
    %v1718 = vpack.c.b16 %v1654, %v1650
    %v1719 = vpack.c.b16 %v1655, %v1651
    %v1720 = vpack.c.b16 %v1656, %v1652
    %v1721 = vpack.c.b16 %v1657, %v1653
    %1786 = vmatpush.bf16.msra.mxu0 %v1686
    %1787 = vmatpush.bf16.msra.mxu0 %v1682
    %1788 = vmatpush.bf16.msra.mxu0 %v1678
    %1789 = vmatpush.bf16.msra.mxu0 %v1674
    %1790 = vmatpush.bf16.msra.mxu0 %v1670
    %1791 = vmatpush.bf16.msra.mxu0 %v1666
    %1792 = vmatpush.bf16.msra.mxu0 %v1662
    %1793 = vmatpush.bf16.msra.mxu0 %v1658
    %1794 = vmatmul.bf16.gmra.mxu0 %v1390
    %v1795 = vpop.f32.mrf.mxu0
    %v1796 = vadd.f32 %v1458, %v1795
    %v1797 = vpop.f32.mrf.mxu0
    %v1798 = vadd.f32 %v1458, %v1797
    %1799 = vdwg.mxu0
    %1800 = vmatpush.bf16.msra.mxu0 %v1718
    %1801 = vmatpush.bf16.msra.mxu0 %v1714
    %1802 = vmatpush.bf16.msra.mxu0 %v1710
    %1803 = vmatpush.bf16.msra.mxu0 %v1706
    %1804 = vmatpush.bf16.msra.mxu0 %v1702
    %1805 = vmatpush.bf16.msra.mxu0 %v1698
    %1806 = vmatpush.bf16.msra.mxu0 %v1694
    %1807 = vmatpush.bf16.msra.mxu0 %v1690
    %1808 = vmatmul.bf16.gmra.mxu0 %v1391
    %v1809 = vpop.f32.mrf.mxu0
    %v1810 = vadd.f32 %v1796, %v1809
    %v1811 = vpop.f32.mrf.mxu0
    %v1812 = vadd.f32 %v1798, %v1811
    %1813 = vdwg.mxu0
    %1814 = vmatpush.bf16.msra.mxu0 %v1687
    %1815 = vmatpush.bf16.msra.mxu0 %v1683
    %1816 = vmatpush.bf16.msra.mxu0 %v1679
    %1817 = vmatpush.bf16.msra.mxu0 %v1675
    %1818 = vmatpush.bf16.msra.mxu0 %v1671
    %1819 = vmatpush.bf16.msra.mxu0 %v1667
    %1820 = vmatpush.bf16.msra.mxu0 %v1663
    %1821 = vmatpush.bf16.msra.mxu0 %v1659
    %1822 = vmatmul.bf16.gmra.mxu0 %v1390
    %v1823 = vpop.f32.mrf.mxu0
    %v1824 = vadd.f32 %v1459, %v1823
    %v1825 = vpop.f32.mrf.mxu0
    %v1826 = vadd.f32 %v1459, %v1825
    %1827 = vdwg.mxu0
    %1828 = vmatpush.bf16.msra.mxu0 %v1719
    %1829 = vmatpush.bf16.msra.mxu0 %v1715
    %1830 = vmatpush.bf16.msra.mxu0 %v1711
    %1831 = vmatpush.bf16.msra.mxu0 %v1707
    %1832 = vmatpush.bf16.msra.mxu0 %v1703
    %1833 = vmatpush.bf16.msra.mxu0 %v1699
    %1834 = vmatpush.bf16.msra.mxu0 %v1695
    %1835 = vmatpush.bf16.msra.mxu0 %v1691
    %1836 = vmatmul.bf16.gmra.mxu0 %v1391
    %v1837 = vpop.f32.mrf.mxu0
    %v1838 = vadd.f32 %v1824, %v1837
    %v1839 = vpop.f32.mrf.mxu0
    %v1840 = vadd.f32 %v1826, %v1839
    %1841 = vdwg.mxu0
    %1842 = vmatpush.bf16.msra.mxu0 %v1688
    %1843 = vmatpush.bf16.msra.mxu0 %v1684
    %1844 = vmatpush.bf16.msra.mxu0 %v1680
    %1845 = vmatpush.bf16.msra.mxu0 %v1676
    %1846 = vmatpush.bf16.msra.mxu0 %v1672
    %1847 = vmatpush.bf16.msra.mxu0 %v1668
    %1848 = vmatpush.bf16.msra.mxu0 %v1664
    %1849 = vmatpush.bf16.msra.mxu0 %v1660
    %1850 = vmatmul.bf16.gmra.mxu0 %v1390
    %v1851 = vpop.f32.mrf.mxu0
    %v1852 = vadd.f32 %v1460, %v1851
    %v1853 = vpop.f32.mrf.mxu0
    %v1854 = vadd.f32 %v1460, %v1853
    %1855 = vdwg.mxu0
    %1856 = vmatpush.bf16.msra.mxu0 %v1720
    %1857 = vmatpush.bf16.msra.mxu0 %v1716
    %1858 = vmatpush.bf16.msra.mxu0 %v1712
    %1859 = vmatpush.bf16.msra.mxu0 %v1708
    %1860 = vmatpush.bf16.msra.mxu0 %v1704
    %1861 = vmatpush.bf16.msra.mxu0 %v1700
    %1862 = vmatpush.bf16.msra.mxu0 %v1696
    %1863 = vmatpush.bf16.msra.mxu0 %v1692
    %1864 = vmatmul.bf16.gmra.mxu0 %v1391
    %v1865 = vpop.f32.mrf.mxu0
    %v1866 = vadd.f32 %v1852, %v1865
    %v1867 = vpop.f32.mrf.mxu0
    %v1868 = vadd.f32 %v1854, %v1867
    %1869 = vdwg.mxu0
    %1870 = vmatpush.bf16.msra.mxu0 %v1689
    %1871 = vmatpush.bf16.msra.mxu0 %v1685
    %1872 = vmatpush.bf16.msra.mxu0 %v1681
    %1873 = vmatpush.bf16.msra.mxu0 %v1677
    %1874 = vmatpush.bf16.msra.mxu0 %v1673
    %1875 = vmatpush.bf16.msra.mxu0 %v1669
    %1876 = vmatpush.bf16.msra.mxu0 %v1665
    %1877 = vmatpush.bf16.msra.mxu0 %v1661
    %1878 = vmatmul.bf16.gmra.mxu0 %v1390
    %v1879 = vpop.f32.mrf.mxu0
    %v1880 = vadd.f32 %v1461, %v1879
    %v1881 = vpop.f32.mrf.mxu0
    %v1882 = vadd.f32 %v1461, %v1881
    %1883 = vdwg.mxu0
    %1884 = vmatpush.bf16.msra.mxu0 %v1721
    %1885 = vmatpush.bf16.msra.mxu0 %v1717
    %1886 = vmatpush.bf16.msra.mxu0 %v1713
    %1887 = vmatpush.bf16.msra.mxu0 %v1709
    %1888 = vmatpush.bf16.msra.mxu0 %v1705
    %1889 = vmatpush.bf16.msra.mxu0 %v1701
    %1890 = vmatpush.bf16.msra.mxu0 %v1697
    %1891 = vmatpush.bf16.msra.mxu0 %v1693
    %1892 = vmatmul.bf16.gmra.mxu0 %v1391
    %v1893 = vpop.f32.mrf.mxu0
    %v1894 = vadd.f32 %v1880, %v1893
    %v1895 = vpop.f32.mrf.mxu0
    %v1896 = vadd.f32 %v1882, %v1895
    %1897 = vdwg.mxu0
    %v1898 = vmax.f32 %v1810, 0.0
    %v1899 = vmax.f32 %v1838, 0.0
    %v1900 = vmax.f32 %v1866, 0.0
    %v1901 = vmax.f32 %v1894, 0.0
    %v1902 = vmax.f32 %v1812, 0.0
    %v1903 = vmax.f32 %v1840, 0.0
    %v1904 = vmax.f32 %v1868, 0.0
    %v1905 = vmax.f32 %v1896, 0.0
    %v1906 = vpack.c.bf16 %v1902, %v1898
    %v1907 = vpack.c.bf16 %v1903, %v1899
    %v1908 = vpack.c.bf16 %v1904, %v1900
    %v1909 = vpack.c.bf16 %v1905, %v1901
    %v1910 = vld [vmem:[#allocation17] sm:$0xf]
    %v1911 = vld [vmem:[#allocation17 + $0x4] sm:$0xf]
    %v1912 = vld [vmem:[#allocation17 + $0x8] sm:$0xf]
    %v1913 = vld [vmem:[#allocation17 + $0xc] sm:$0xf]
    %v1914 = vld [vmem:[#allocation17 + $0x10] sm:$0xf]
    %v1915 = vld [vmem:[#allocation17 + $0x14] sm:$0xf]
    %v1916 = vld [vmem:[#allocation17 + $0x18] sm:$0xf]
    %v1917 = vld [vmem:[#allocation17 + $0x1c] sm:$0xf]
    %v1918 = vld [vmem:[#allocation17 + $0x20] sm:$0xf]
    %v1919 = vld [vmem:[#allocation17 + $0x24] sm:$0xf]
    %v1920 = vld [vmem:[#allocation17 + $0x28] sm:$0xf]
    %v1921 = vld [vmem:[#allocation17 + $0x2c] sm:$0xf]
    %v1922 = vld [vmem:[#allocation17 + $0x30] sm:$0xf]
    %v1923 = vld [vmem:[#allocation17 + $0x34] sm:$0xf]
    %v1924 = vld [vmem:[#allocation17 + $0x38] sm:$0xf]
    %v1925 = vld [vmem:[#allocation17 + $0x3c] sm:$0xf]
    %v1926 = vld [vmem:[#allocation17 + $0x40] sm:$0xf]
    %v1927 = vld [vmem:[#allocation17 + $0x44] sm:$0xf]
    %v1928 = vld [vmem:[#allocation17 + $0x48] sm:$0xf]
    %v1929 = vld [vmem:[#allocation17 + $0x4c] sm:$0xf]
    %v1930 = vld [vmem:[#allocation17 + $0x50] sm:$0xf]
    %v1931 = vld [vmem:[#allocation17 + $0x54] sm:$0xf]
    %v1932 = vld [vmem:[#allocation17 + $0x58] sm:$0xf]
    %v1933 = vld [vmem:[#allocation17 + $0x5c] sm:$0xf]
    %v1934 = vld [vmem:[#allocation17 + $0x60] sm:$0xf]
    %v1935 = vld [vmem:[#allocation17 + $0x64] sm:$0xf]
    %v1936 = vld [vmem:[#allocation17 + $0x68] sm:$0xf]
    %v1937 = vld [vmem:[#allocation17 + $0x6c] sm:$0xf]
    %v1938 = vld [vmem:[#allocation17 + $0x70] sm:$0xf]
    %v1939 = vld [vmem:[#allocation17 + $0x74] sm:$0xf]
    %v1940 = vld [vmem:[#allocation17 + $0x78] sm:$0xf]
    %v1941 = vld [vmem:[#allocation17 + $0x7c] sm:$0xf]
    %v1942 = vld [vmem:[#allocation17 + $0x80] sm:$0xf]
    %v1943 = vld [vmem:[#allocation17 + $0x84] sm:$0xf]
    %v1944 = vld [vmem:[#allocation17 + $0x88] sm:$0xf]
    %v1945 = vld [vmem:[#allocation17 + $0x8c] sm:$0xf]
    %v1946 = vld [vmem:[#allocation17 + $0x90] sm:$0xf]
    %v1947 = vld [vmem:[#allocation17 + $0x94] sm:$0xf]
    %v1948 = vld [vmem:[#allocation17 + $0x98] sm:$0xf]
    %v1949 = vld [vmem:[#allocation17 + $0x9c] sm:$0xf]
    %v1950 = vld [vmem:[#allocation17 + $0xa0] sm:$0xf]
    %v1951 = vld [vmem:[#allocation17 + $0xa4] sm:$0xf]
    %v1952 = vld [vmem:[#allocation17 + $0xa8] sm:$0xf]
    %v1953 = vld [vmem:[#allocation17 + $0xac] sm:$0xf]
    %v1954 = vld [vmem:[#allocation17 + $0xb0] sm:$0xf]
    %v1955 = vld [vmem:[#allocation17 + $0xb4] sm:$0xf]
    %v1956 = vld [vmem:[#allocation17 + $0xb8] sm:$0xf]
    %v1957 = vld [vmem:[#allocation17 + $0xbc] sm:$0xf]
    %v1958 = vld [vmem:[#allocation17 + $0xc0] sm:$0xf]
    %v1959 = vld [vmem:[#allocation17 + $0xc4] sm:$0xf]
    %v1960 = vld [vmem:[#allocation17 + $0xc8] sm:$0xf]
    %v1961 = vld [vmem:[#allocation17 + $0xcc] sm:$0xf]
    %v1962 = vld [vmem:[#allocation17 + $0xd0] sm:$0xf]
    %v1963 = vld [vmem:[#allocation17 + $0xd4] sm:$0xf]
    %v1964 = vld [vmem:[#allocation17 + $0xd8] sm:$0xf]
    %v1965 = vld [vmem:[#allocation17 + $0xdc] sm:$0xf]
    %v1966 = vld [vmem:[#allocation17 + $0xe0] sm:$0xf]
    %v1967 = vld [vmem:[#allocation17 + $0xe4] sm:$0xf]
    %v1968 = vld [vmem:[#allocation17 + $0xe8] sm:$0xf]
    %v1969 = vld [vmem:[#allocation17 + $0xec] sm:$0xf]
    %v1970 = vld [vmem:[#allocation17 + $0xf0] sm:$0xf]
    %v1971 = vld [vmem:[#allocation17 + $0xf4] sm:$0xf]
    %v1972 = vld [vmem:[#allocation17 + $0xf8] sm:$0xf]
    %v1973 = vld [vmem:[#allocation17 + $0xfc] sm:$0xf]
    %v1974 = vld [vmem:[%s13] sm:$0x1]
    %v1976 = vperm.slane %v1974, 0
    %v2042 = vunpack.c.l.b16 %v1910
    %v2043 = vunpack.c.l.b16 %v1911
    %v2044 = vunpack.c.l.b16 %v1912
    %v2045 = vunpack.c.l.b16 %v1913
    %v2046 = vunpack.c.l.b16 %v1914
    %v2047 = vunpack.c.l.b16 %v1915
    %v2048 = vunpack.c.l.b16 %v1916
    %v2049 = vunpack.c.l.b16 %v1917
    %v2050 = vunpack.c.l.b16 %v1918
    %v2051 = vunpack.c.l.b16 %v1919
    %v2052 = vunpack.c.l.b16 %v1920
    %v2053 = vunpack.c.l.b16 %v1921
    %v2054 = vunpack.c.l.b16 %v1922
    %v2055 = vunpack.c.l.b16 %v1923
    %v2056 = vunpack.c.l.b16 %v1924
    %v2057 = vunpack.c.l.b16 %v1925
    %v2058 = vunpack.c.l.b16 %v1926
    %v2059 = vunpack.c.l.b16 %v1927
    %v2060 = vunpack.c.l.b16 %v1928
    %v2061 = vunpack.c.l.b16 %v1929
    %v2062 = vunpack.c.l.b16 %v1930
    %v2063 = vunpack.c.l.b16 %v1931
    %v2064 = vunpack.c.l.b16 %v1932
    %v2065 = vunpack.c.l.b16 %v1933
    %v2066 = vunpack.c.l.b16 %v1934
    %v2067 = vunpack.c.l.b16 %v1935
    %v2068 = vunpack.c.l.b16 %v1936
    %v2069 = vunpack.c.l.b16 %v1937
    %v2070 = vunpack.c.l.b16 %v1938
    %v2071 = vunpack.c.l.b16 %v1939
    %v2072 = vunpack.c.l.b16 %v1940
    %v2073 = vunpack.c.l.b16 %v1941
    %v2074 = vunpack.c.l.b16 %v1942
    %v2075 = vunpack.c.l.b16 %v1943
    %v2076 = vunpack.c.l.b16 %v1944
    %v2077 = vunpack.c.l.b16 %v1945
    %v2078 = vunpack.c.l.b16 %v1946
    %v2079 = vunpack.c.l.b16 %v1947
    %v2080 = vunpack.c.l.b16 %v1948
    %v2081 = vunpack.c.l.b16 %v1949
    %v2082 = vunpack.c.l.b16 %v1950
    %v2083 = vunpack.c.l.b16 %v1951
    %v2084 = vunpack.c.l.b16 %v1952
    %v2085 = vunpack.c.l.b16 %v1953
    %v2086 = vunpack.c.l.b16 %v1954
    %v2087 = vunpack.c.l.b16 %v1955
    %v2088 = vunpack.c.l.b16 %v1956
    %v2089 = vunpack.c.l.b16 %v1957
    %v2090 = vunpack.c.l.b16 %v1958
    %v2091 = vunpack.c.l.b16 %v1959
    %v2092 = vunpack.c.l.b16 %v1960
    %v2093 = vunpack.c.l.b16 %v1961
    %v2094 = vunpack.c.l.b16 %v1962
    %v2095 = vunpack.c.l.b16 %v1963
    %v2096 = vunpack.c.l.b16 %v1964
    %v2097 = vunpack.c.l.b16 %v1965
    %v2098 = vunpack.c.l.b16 %v1966
    %v2099 = vunpack.c.l.b16 %v1967
    %v2100 = vunpack.c.l.b16 %v1968
    %v2101 = vunpack.c.l.b16 %v1969
    %v2102 = vunpack.c.l.b16 %v1970
    %v2103 = vunpack.c.l.b16 %v1971
    %v2104 = vunpack.c.l.b16 %v1972
    %v2105 = vunpack.c.l.b16 %v1973
    %v2106 = vpack.c.b16 %v2043, %v2042
    %v2107 = vpack.c.b16 %v2045, %v2044
    %v2108 = vpack.c.b16 %v2047, %v2046
    %v2109 = vpack.c.b16 %v2049, %v2048
    %v2110 = vpack.c.b16 %v2051, %v2050
    %v2111 = vpack.c.b16 %v2053, %v2052
    %v2112 = vpack.c.b16 %v2055, %v2054
    %v2113 = vpack.c.b16 %v2057, %v2056
    %v2114 = vpack.c.b16 %v2059, %v2058
    %v2115 = vpack.c.b16 %v2061, %v2060
    %v2116 = vpack.c.b16 %v2063, %v2062
    %v2117 = vpack.c.b16 %v2065, %v2064
    %v2118 = vpack.c.b16 %v2067, %v2066
    %v2119 = vpack.c.b16 %v2069, %v2068
    %v2120 = vpack.c.b16 %v2071, %v2070
    %v2121 = vpack.c.b16 %v2073, %v2072
    %v2122 = vpack.c.b16 %v2075, %v2074
    %v2123 = vpack.c.b16 %v2077, %v2076
    %v2124 = vpack.c.b16 %v2079, %v2078
    %v2125 = vpack.c.b16 %v2081, %v2080
    %v2126 = vpack.c.b16 %v2083, %v2082
    %v2127 = vpack.c.b16 %v2085, %v2084
    %v2128 = vpack.c.b16 %v2087, %v2086
    %v2129 = vpack.c.b16 %v2089, %v2088
    %v2130 = vpack.c.b16 %v2091, %v2090
    %v2131 = vpack.c.b16 %v2093, %v2092
    %v2132 = vpack.c.b16 %v2095, %v2094
    %v2133 = vpack.c.b16 %v2097, %v2096
    %v2134 = vpack.c.b16 %v2099, %v2098
    %v2135 = vpack.c.b16 %v2101, %v2100
    %v2136 = vpack.c.b16 %v2103, %v2102
    %v2137 = vpack.c.b16 %v2105, %v2104
    %2170 = vmatpush.bf16.msra.mxu0 %v2113
    %2171 = vmatpush.bf16.msra.mxu0 %v2112
    %2172 = vmatpush.bf16.msra.mxu0 %v2111
    %2173 = vmatpush.bf16.msra.mxu0 %v2110
    %2174 = vmatpush.bf16.msra.mxu0 %v2109
    %2175 = vmatpush.bf16.msra.mxu0 %v2108
    %2176 = vmatpush.bf16.msra.mxu0 %v2107
    %2177 = vmatpush.bf16.msra.mxu0 %v2106
    %2178 = vmatmul.bf16.gmra.mxu0 %v1906
    %v2179 = vpop.f32.mrf.mxu0
    %v2180 = vadd.f32 %v1976, %v2179
    %v2181 = vpop.f32.mrf.mxu0
    %v2182 = vadd.f32 %v1976, %v2181
    %2183 = vdwg.mxu0
    %2184 = vmatpush.bf16.msra.mxu0 %v2121
    %2185 = vmatpush.bf16.msra.mxu0 %v2120
    %2186 = vmatpush.bf16.msra.mxu0 %v2119
    %2187 = vmatpush.bf16.msra.mxu0 %v2118
    %2188 = vmatpush.bf16.msra.mxu0 %v2117
    %2189 = vmatpush.bf16.msra.mxu0 %v2116
    %2190 = vmatpush.bf16.msra.mxu0 %v2115
    %2191 = vmatpush.bf16.msra.mxu0 %v2114
    %2192 = vmatmul.bf16.gmra.mxu0 %v1907
    %v2193 = vpop.f32.mrf.mxu0
    %v2194 = vadd.f32 %v2180, %v2193
    %v2195 = vpop.f32.mrf.mxu0
    %v2196 = vadd.f32 %v2182, %v2195
    %2197 = vdwg.mxu0
    %2198 = vmatpush.bf16.msra.mxu0 %v2129
    %2199 = vmatpush.bf16.msra.mxu0 %v2128
    %2200 = vmatpush.bf16.msra.mxu0 %v2127
    %2201 = vmatpush.bf16.msra.mxu0 %v2126
    %2202 = vmatpush.bf16.msra.mxu0 %v2125
    %2203 = vmatpush.bf16.msra.mxu0 %v2124
    %2204 = vmatpush.bf16.msra.mxu0 %v2123
    %2205 = vmatpush.bf16.msra.mxu0 %v2122
    %2206 = vmatmul.bf16.gmra.mxu0 %v1908
    %v2207 = vpop.f32.mrf.mxu0
    %v2208 = vadd.f32 %v2194, %v2207
    %v2209 = vpop.f32.mrf.mxu0
    %v2210 = vadd.f32 %v2196, %v2209
    %2211 = vdwg.mxu0
    %2212 = vmatpush.bf16.msra.mxu0 %v2137
    %2213 = vmatpush.bf16.msra.mxu0 %v2136
    %2214 = vmatpush.bf16.msra.mxu0 %v2135
    %2215 = vmatpush.bf16.msra.mxu0 %v2134
    %2216 = vmatpush.bf16.msra.mxu0 %v2133
    %2217 = vmatpush.bf16.msra.mxu0 %v2132
    %2218 = vmatpush.bf16.msra.mxu0 %v2131
    %2219 = vmatpush.bf16.msra.mxu0 %v2130
    %2220 = vmatmul.bf16.gmra.mxu0 %v1909
    %v2221 = vpop.f32.mrf.mxu0
    %v2222 = vadd.f32 %v2208, %v2221
    %v2223 = vpop.f32.mrf.mxu0
    %v2224 = vadd.f32 %v2210, %v2223
    %2225 = vdwg.mxu0
    %2226 = vst [vmem:[#allocation19] sm:$0xff] %v2222
    %2227 = vst [vmem:[#allocation19 + $0x8] sm:$0xff] %v2224
    %2228 = vst [vmem:[#allocation20] sm:$0xff] %v1211
    %2229 = vst [vmem:[#allocation20 + $0x8] sm:$0xff] %v1239
    %2230 = vst [vmem:[#allocation20 + $0x10] sm:$0xff] %v1213
    %2231 = vst [vmem:[#allocation20 + $0x18] sm:$0xff] %v1241
    // Predicated region
    $region98: #{tpu_custom_call.1} parent=1 // pred_check
      _
    $region99: #{tpu_custom_call.1} parent=1 // pred_check_branch
      %2233 = sbr.rel (0) target = $region101
    $region100: #{tpu_custom_call.1} parent=1 // pred_region
      %2235 = vsyncadd [#allocation4], 0
      %s2236 = sshll.u32 [#allocation19], 4
      %s2237 = int_to_ptr.vmem [resolvable:$true] %s2236
      %s2238 = sshll.u32 %s14, 4
      %s2239 = int_to_ptr.hbm [resolvable:$true] %s2238
      %2244 = dma.vmem_to_hbm [thread:$0]  %s2237, 256, %s2239, [#allocation4], 128, 128, 8
    $region101: #{tpu_custom_call.1} parent=1 // pred_fallthru
      _
    // Predicated region
    $region102: #{tpu_custom_call.1} parent=1 // pred_check
      _
    $region103: #{tpu_custom_call.1} parent=1 // pred_check_branch
      %2246 = sbr.rel (0) target = $region105
    $region104: #{tpu_custom_call.1} parent=1 // pred_region
      %2248 = vsyncadd [#allocation21], 0
      %s2249 = sshll.u32 [#allocation20], 4
      %s2250 = int_to_ptr.vmem [resolvable:$true] %s2249
      %s2251 = sshll.u32 %s15, 4
      %s2252 = int_to_ptr.hbm [resolvable:$true] %s2251
      %2257 = dma.vmem_to_hbm [thread:$0]  %s2250, 512, %s2252, [#allocation21], 256, 256, 16
    $region105: #{tpu_custom_call.1} parent=1 // pred_fallthru
      _
    // Predicated region
    $region106: #{tpu_custom_call.1} parent=1 // pred_check
      _
    $region107: #{tpu_custom_call.1} parent=1 // pred_check_branch
      %2259 = sbr.rel (0) target = $region109
    $region108: #{tpu_custom_call.1} parent=1 // pred_region
      %2261 = dma.done [#allocation4], 256
    $region109: #{tpu_custom_call.1} parent=1 // pred_fallthru
      _
    // Predicated region
    $region110: #{tpu_custom_call.1} parent=1 // pred_check
      _
    $region111: #{tpu_custom_call.1} parent=1 // pred_check_branch
      %2263 = sbr.rel (0) target = $region113
    $region112: #{tpu_custom_call.1} parent=1 // pred_region
      %2265 = dma.done [#allocation21], 512
    $region113: #{tpu_custom_call.1} parent=1 // pred_fallthru
      _
    %2266 = vsyncpa [#allocation3], 1
    %2267 = vsyncpa [#allocation6], 1
    %2268 = vsyncpa [#allocation9], 1
    %2269 = vsyncpa [#allocation12], 1
    %2270 = vsyncpa [#allocation15], 1
    %2271 = vsyncpa [#allocation18], 1
    %2272 = vsyncpa [#allocation4], 1
    %2273 = vsyncpa [#allocation21], 1

</llo_original>
